<compile_context>
chip_gen: v7x
topology: tpu7x:2x2x1
jax: 0.10.0
libtpu: 0.0.40
codegen_flags: <defaults>
</compile_context>

<pallas_src>
import functools

import jax
import jax.numpy as jnp
from jax.experimental import pallas as pl
from jax.experimental.pallas import tpu as pltpu


def _component_kernel(x_ref, w_ref, scale_ref, bias_ref, o_ref, col_ref,
                      *, H, W, Cin, K, Cp):
    # x_ref:     (1, H+K-1, W+K-1, Cin)  padded NHWC tile for one image (f32)
    # w_ref:     (K*K*Cin, Cp)           conv weight in im2col order, bf16,
    #                                    zero-padded to Cp lanes
    # scale_ref: (1, Cp)   folded BN scale (gamma / sqrt(var + eps)), f32
    # bias_ref:  (1, Cp)   folded BN bias  (beta - mean * scale), f32
    # o_ref:     (1, H, W, Cp)           lane-dense output tile
    # col_ref:   (H*W, K*K*Cin) f32 VMEM scratch -- the im2col matrix
    xp = x_ref[0]                                    # (H+2p, W+2p, Cin)

    # im2col once per image: tap (dy, dx) fills columns [tap*Cin, tap*Cin+Cin).
    # (static slices; the reshape only collapses major dims, minor unchanged)
    for dy in range(K):
        for dx in range(K):
            tap = dy * K + dx
            col_ref[:, tap * Cin:(tap + 1) * Cin] = (
                xp[dy:dy + H, dx:dx + W, :].reshape(H * W, Cin))

    # One MXU matmul, contraction K*K*Cin, bf16 operands, f32 accumulation.
    col = col_ref[...].astype(w_ref.dtype)           # (H*W, K*K*Cin) bf16
    acc = jnp.dot(col, w_ref[...],
                  preferred_element_type=jnp.float32)  # (H*W, Cp) f32

    # Folded-BN + ReLU epilogue in f32 on the 2-D accumulator, then a single
    # major-dim-split reshape and a full-width (128-lane dense) store.
    y = jnp.maximum(acc * scale_ref[...] + bias_ref[...], 0.0)
    o_ref[0] = y.reshape(H, W, Cp).astype(o_ref.dtype)


def base_component_forward(x_nchw, weight, bn_scale, bn_bias):
    """Forward of BaseComponent with component = Conv3x3(pad=1) + BN + ReLU.

    x_nchw: [N, Cin, H, W] float32
    weight: [K, K, Cin, Cout] float32 (HWIO)
    bn_scale, bn_bias: [Cout] float32 (already-folded BN affine)
    returns: [N, Cout, H, W] float32
    """
    N, Cin, H, W = x_nchw.shape
    K = weight.shape[0]
    Cout = weight.shape[-1]
    pad = (K - 1) // 2
    Cp = max(128, ((Cout + 127) // 128) * 128)   # lane-dense output width

    # ---- glue (tiny; XLA fuses each side into ~one pass) -------------------
    # TODO(synk): in an NHWC end-to-end model this transpose disappears; the
    # pad could also be absorbed into the kernel, but at these sizes it is
    # noise and the wrapper pad is the known-good lowering path.
    x_nhwc = jnp.transpose(x_nchw, (0, 2, 3, 1))
    x_pad = jnp.pad(x_nhwc, ((0, 0), (pad, pad), (pad, pad), (0, 0)))

    # Weight folded to a single (K*K*Cin, Cp) bf16 matmul operand (im2col
    # order (dy, dx, ci)); BN scale/bias zero-padded to the lane-dense width.
    w_mat = weight.reshape(K * K * Cin, Cout)
    w_mat = jnp.pad(w_mat, ((0, 0), (0, Cp - Cout))).astype(jnp.bfloat16)
    scale_p = jnp.pad(bn_scale, (0, Cp - Cout)).reshape(1, Cp).astype(jnp.float32)
    bias_p = jnp.pad(bn_bias, (0, Cp - Cout)).reshape(1, Cp).astype(jnp.float32)

    kernel = functools.partial(_component_kernel, H=H, W=W, Cin=Cin, K=K, Cp=Cp)

    out_nhwc = pl.pallas_call(
        kernel,
        out_shape=jax.ShapeDtypeStruct((N, H, W, Cp), x_nchw.dtype),
        grid_spec=pltpu.PrefetchScalarGridSpec(
            num_scalar_prefetch=0,
            grid=(N,),
            in_specs=[
                pl.BlockSpec((1, H + 2 * pad, W + 2 * pad, Cin),
                             lambda n: (n, 0, 0, 0)),
                pl.BlockSpec((K * K * Cin, Cp), lambda n: (0, 0)),
                pl.BlockSpec((1, Cp), lambda n: (0, 0)),
                pl.BlockSpec((1, Cp), lambda n: (0, 0)),
            ],
            out_specs=pl.BlockSpec((1, H, W, Cp), lambda n: (n, 0, 0, 0)),
            scratch_shapes=[pltpu.VMEM((H * W, K * K * Cin), jnp.float32)],
        ),
        # One image per grid step; "parallel" lets a v7x megacore place one
        # image on each TensorCore.  At production sizes also tile H and raise
        # vmem_limit_bytes here (per review); blocks are KB-scale at this size.
        compiler_params=pltpu.CompilerParams(
            dimension_semantics=("parallel",)),
    )(x_pad, w_mat, scale_p, bias_p)

    # Strip the lane padding and return NCHW to match the PyTorch module.
    return jnp.transpose(out_nhwc[..., :Cout], (0, 3, 1, 2))


def _reference(x_nchw, weight, bn_scale, bn_bias):
    # Pure-JAX (f32) reference for the same component.
    y = jax.lax.conv_general_dilated(
        x_nchw, weight,
        window_strides=(1, 1), padding="SAME",
        dimension_numbers=("NCHW", "HWIO", "NCHW"))
    y = y * bn_scale.reshape(1, -1, 1, 1) + bn_bias.reshape(1, -1, 1, 1)
    return jnp.maximum(y, 0.0)


if __name__ == "__main__":
    # TODO(synk): BaseComponent's `component` is config-dependent in vedastr;
    # a Conv+BN+ReLU ConvModule is used here as the concrete instantiation.
    key = jax.random.PRNGKey(0)
    k_x, k_w, k_g, k_b, k_m, k_v = jax.random.split(key, 6)

    N, Cin, H, W = 2, 4, 16, 16
    Cout, K = 8, 3

    x = jax.random.normal(k_x, (N, Cin, H, W), dtype=jnp.float32)
    weight = 0.1 * jax.random.normal(k_w, (K, K, Cin, Cout), dtype=jnp.float32)

    # Deterministic BN stats/affine, folded into a per-channel scale & bias.
    gamma = 1.0 + 0.1 * jax.random.normal(k_g, (Cout,), dtype=jnp.float32)
    beta = 0.1 * jax.random.normal(k_b, (Cout,), dtype=jnp.float32)
    running_mean = 0.05 * jax.random.normal(k_m, (Cout,), dtype=jnp.float32)
    running_var = 1.0 + 0.1 * jax.random.uniform(k_v, (Cout,), dtype=jnp.float32)
    eps = 1e-5
    bn_scale = gamma / jnp.sqrt(running_var + eps)
    bn_bias = beta - running_mean * bn_scale

    out = base_component_forward(x, weight, bn_scale, bn_bias)
    out = jax.block_until_ready(out)

    ref = _reference(x, weight, bn_scale, bn_bias)
    assert out.shape == (N, Cout, H, W)
    # bf16 MXU operands with f32 accumulation vs. a pure-f32 reference:
    # tolerance loosened accordingly (per the review's correctness note).
    assert jnp.allclose(out, ref, atol=2e-2, rtol=2e-2), \
        float(jnp.max(jnp.abs(out - ref)))

    print("KERNEL_OK")
</pallas_src>

<mosaic_0001>
module attributes {stable_mosaic.version = 11 : i64} {
  func.func @_component_kernel(%arg0: i32, %arg1: memref<1x18x18x4xf32, #tpu.memory_space<vmem>>, %arg2: memref<36x128xbf16, #tpu.memory_space<vmem>>, %arg3: memref<1x128xf32, #tpu.memory_space<vmem>>, %arg4: memref<1x128xf32, #tpu.memory_space<vmem>>, %arg5: memref<1x16x16x128xf32, #tpu.memory_space<vmem>>, %arg6: memref<256x36xf32, #tpu.memory_space<vmem>>) attributes {dimension_semantics = [#tpu.dimension_semantics<parallel>], iteration_bounds = array<i64: 2>, scalar_prefetch = 0 : i64, scratch_operands = 1 : i64, tpu.core_type = #tpu.core_type<tc>, window_params = [{transform_indices = @transform_0, window_bounds = array<i64: 1, 18, 18, 4>}, {pipeline_mode = #tpu.pipeline_mode<synchronous>, transform_indices = @transform_1, window_bounds = array<i64: 36, 128>}, {pipeline_mode = #tpu.pipeline_mode<synchronous>, transform_indices = @transform_2, window_bounds = array<i64: 1, 128>}, {pipeline_mode = #tpu.pipeline_mode<synchronous>, transform_indices = @transform_3, window_bounds = array<i64: 1, 128>}, {transform_indices = @transform_4, window_bounds = array<i64: 1, 16, 16, 128>}]} {
    %c0 = arith.constant 0 : index
    %c0_0 = arith.constant 0 : index
    %c0_1 = arith.constant 0 : index
    %c0_2 = arith.constant 0 : index
    %0 = vector.load %arg1[%c0, %c0_0, %c0_1, %c0_2] : memref<1x18x18x4xf32, #tpu.memory_space<vmem>>, vector<1x18x18x4xf32>
    %1 = vector.shape_cast %0 : vector<1x18x18x4xf32> to vector<18x18x4xf32>
    %2 = vector.extract_strided_slice %1 {offsets = [0, 0, 0], sizes = [16, 16, 4], strides = [1, 1, 1]} : vector<18x18x4xf32> to vector<16x16x4xf32>
    %3 = vector.shape_cast %2 : vector<16x16x4xf32> to vector<256x4xf32>
    %c0_3 = arith.constant 0 : index
    %c0_4 = arith.constant 0 : index
    %4 = vector.load %arg6[%c0_3, %c0_4] : memref<256x36xf32, #tpu.memory_space<vmem>>, vector<256x4xf32>
    tpu.vector_store %arg6[%c0_3, %c0_4], %3 {strides = array<i32>} : memref<256x36xf32, #tpu.memory_space<vmem>>, vector<256x4xf32>,
    %5 = vector.extract_strided_slice %1 {offsets = [0, 1, 0], sizes = [16, 16, 4], strides = [1, 1, 1]} : vector<18x18x4xf32> to vector<16x16x4xf32>
    %6 = vector.shape_cast %5 : vector<16x16x4xf32> to vector<256x4xf32>
    %c0_5 = arith.constant 0 : index
    %c4 = arith.constant 4 : index
    %7 = vector.load %arg6[%c0_5, %c4] : memref<256x36xf32, #tpu.memory_space<vmem>>, vector<256x4xf32>
    tpu.vector_store %arg6[%c0_5, %c4], %6 {strides = array<i32>} : memref<256x36xf32, #tpu.memory_space<vmem>>, vector<256x4xf32>,
    %8 = vector.extract_strided_slice %1 {offsets = [0, 2, 0], sizes = [16, 16, 4], strides = [1, 1, 1]} : vector<18x18x4xf32> to vector<16x16x4xf32>
    %9 = vector.shape_cast %8 : vector<16x16x4xf32> to vector<256x4xf32>
    %c0_6 = arith.constant 0 : index
    %c8 = arith.constant 8 : index
    %10 = vector.load %arg6[%c0_6, %c8] : memref<256x36xf32, #tpu.memory_space<vmem>>, vector<256x4xf32>
    tpu.vector_store %arg6[%c0_6, %c8], %9 {strides = array<i32>} : memref<256x36xf32, #tpu.memory_space<vmem>>, vector<256x4xf32>,
    %11 = vector.extract_strided_slice %1 {offsets = [1, 0, 0], sizes = [16, 16, 4], strides = [1, 1, 1]} : vector<18x18x4xf32> to vector<16x16x4xf32>
    %12 = vector.shape_cast %11 : vector<16x16x4xf32> to vector<256x4xf32>
    %c0_7 = arith.constant 0 : index
    %c12 = arith.constant 12 : index
    %13 = vector.load %arg6[%c0_7, %c12] : memref<256x36xf32, #tpu.memory_space<vmem>>, vector<256x4xf32>
    tpu.vector_store %arg6[%c0_7, %c12], %12 {strides = array<i32>} : memref<256x36xf32, #tpu.memory_space<vmem>>, vector<256x4xf32>,
    %14 = vector.extract_strided_slice %1 {offsets = [1, 1, 0], sizes = [16, 16, 4], strides = [1, 1, 1]} : vector<18x18x4xf32> to vector<16x16x4xf32>
    %15 = vector.shape_cast %14 : vector<16x16x4xf32> to vector<256x4xf32>
    %c0_8 = arith.constant 0 : index
    %c16 = arith.constant 16 : index
    %16 = vector.load %arg6[%c0_8, %c16] : memref<256x36xf32, #tpu.memory_space<vmem>>, vector<256x4xf32>
    tpu.vector_store %arg6[%c0_8, %c16], %15 {strides = array<i32>} : memref<256x36xf32, #tpu.memory_space<vmem>>, vector<256x4xf32>,
    %17 = vector.extract_strided_slice %1 {offsets = [1, 2, 0], sizes = [16, 16, 4], strides = [1, 1, 1]} : vector<18x18x4xf32> to vector<16x16x4xf32>
    %18 = vector.shape_cast %17 : vector<16x16x4xf32> to vector<256x4xf32>
    %c0_9 = arith.constant 0 : index
    %c20 = arith.constant 20 : index
    %19 = vector.load %arg6[%c0_9, %c20] : memref<256x36xf32, #tpu.memory_space<vmem>>, vector<256x4xf32>
    tpu.vector_store %arg6[%c0_9, %c20], %18 {strides = array<i32>} : memref<256x36xf32, #tpu.memory_space<vmem>>, vector<256x4xf32>,
    %20 = vector.extract_strided_slice %1 {offsets = [2, 0, 0], sizes = [16, 16, 4], strides = [1, 1, 1]} : vector<18x18x4xf32> to vector<16x16x4xf32>
    %21 = vector.shape_cast %20 : vector<16x16x4xf32> to vector<256x4xf32>
    %c0_10 = arith.constant 0 : index
    %c24 = arith.constant 24 : index
    %22 = vector.load %arg6[%c0_10, %c24] : memref<256x36xf32, #tpu.memory_space<vmem>>, vector<256x4xf32>
    tpu.vector_store %arg6[%c0_10, %c24], %21 {strides = array<i32>} : memref<256x36xf32, #tpu.memory_space<vmem>>, vector<256x4xf32>,
    %23 = vector.extract_strided_slice %1 {offsets = [2, 1, 0], sizes = [16, 16, 4], strides = [1, 1, 1]} : vector<18x18x4xf32> to vector<16x16x4xf32>
    %24 = vector.shape_cast %23 : vector<16x16x4xf32> to vector<256x4xf32>
    %c0_11 = arith.constant 0 : index
    %c28 = arith.constant 28 : index
    %25 = vector.load %arg6[%c0_11, %c28] : memref<256x36xf32, #tpu.memory_space<vmem>>, vector<256x4xf32>
    tpu.vector_store %arg6[%c0_11, %c28], %24 {strides = array<i32>} : memref<256x36xf32, #tpu.memory_space<vmem>>, vector<256x4xf32>,
    %26 = vector.extract_strided_slice %1 {offsets = [2, 2, 0], sizes = [16, 16, 4], strides = [1, 1, 1]} : vector<18x18x4xf32> to vector<16x16x4xf32>
    %27 = vector.shape_cast %26 : vector<16x16x4xf32> to vector<256x4xf32>
    %c0_12 = arith.constant 0 : index
    %c32 = arith.constant 32 : index
    %28 = vector.load %arg6[%c0_12, %c32] : memref<256x36xf32, #tpu.memory_space<vmem>>, vector<256x4xf32>
    tpu.vector_store %arg6[%c0_12, %c32], %27 {strides = array<i32>} : memref<256x36xf32, #tpu.memory_space<vmem>>, vector<256x4xf32>,
    %c0_13 = arith.constant 0 : index
    %c0_14 = arith.constant 0 : index
    %29 = vector.load %arg6[%c0_13, %c0_14] : memref<256x36xf32, #tpu.memory_space<vmem>>, vector<256x36xf32>
    %30 = arith.truncf %29 : vector<256x36xf32> to vector<256x36xbf16>
    %c0_15 = arith.constant 0 : index
    %c0_16 = arith.constant 0 : index
    %31 = vector.load %arg2[%c0_15, %c0_16] : memref<36x128xbf16, #tpu.memory_space<vmem>>, vector<36x128xbf16>
    %cst = arith.constant dense<0.000000e+00> : vector<256x128xf32>
    %32 = tpu.matmul %30, %31, %cst {dimension_numbers = #tpu.dot_dimension_numbers<[1], [0], [0], [1], [0, 0, 1, 1], [], []>} : vector<256x36xbf16>, vector<36x128xbf16>, vector<256x128xf32> -> vector<256x128xf32>
    %c0_17 = arith.constant 0 : index
    %c0_18 = arith.constant 0 : index
    %33 = vector.load %arg3[%c0_17, %c0_18] : memref<1x128xf32, #tpu.memory_space<vmem>>, vector<1x128xf32>
    %34 = vector.broadcast %33 : vector<1x128xf32> to vector<256x128xf32>
    %35 = arith.mulf %32, %34 : vector<256x128xf32>
    %c0_19 = arith.constant 0 : index
    %c0_20 = arith.constant 0 : index
    %36 = vector.load %arg4[%c0_19, %c0_20] : memref<1x128xf32, #tpu.memory_space<vmem>>, vector<1x128xf32>
    %37 = vector.broadcast %36 : vector<1x128xf32> to vector<256x128xf32>
    %38 = arith.addf %35, %37 : vector<256x128xf32>
    %cst_21 = arith.constant 0.000000e+00 : f32
    %39 = vector.broadcast %cst_21 : f32 to vector<256x128xf32>
    %40 = arith.maximumf %38, %39 : vector<256x128xf32>
    %41 = vector.shape_cast %40 : vector<256x128xf32> to vector<16x16x128xf32>
    %c0_22 = arith.constant 0 : index
    %c0_23 = arith.constant 0 : index
    %c0_24 = arith.constant 0 : index
    %c0_25 = arith.constant 0 : index
    %42 = vector.load %arg5[%c0_22, %c0_23, %c0_24, %c0_25] : memref<1x16x16x128xf32, #tpu.memory_space<vmem>>, vector<1x16x16x128xf32>
    %43 = vector.shape_cast %42 : vector<1x16x16x128xf32> to vector<16x16x128xf32>
    %44 = vector.shape_cast %41 : vector<16x16x128xf32> to vector<1x16x16x128xf32>
    tpu.vector_store %arg5[%c0_22, %c0_23, %c0_24, %c0_25], %44 {strides = array<i32>} : memref<1x16x16x128xf32, #tpu.memory_space<vmem>>, vector<1x16x16x128xf32>,
    return
  }
  func.func @transform_0(%arg0: i32) -> (i32, i32, i32, i32) {
    %c0_i32 = arith.constant 0 : i32
    %c0_i32_0 = arith.constant 0 : i32
    %c0_i32_1 = arith.constant 0 : i32
    %c0_i32_2 = arith.constant 0 : i32
    return %arg0, %c0_i32, %c0_i32_0, %c0_i32_1 : i32, i32, i32, i32
  }
  func.func @transform_1(%arg0: i32) -> (i32, i32) {
    %c0_i32 = arith.constant 0 : i32
    %c0_i32_0 = arith.constant 0 : i32
    %c0_i32_1 = arith.constant 0 : i32
    return %c0_i32, %c0_i32_0 : i32, i32
  }
  func.func @transform_2(%arg0: i32) -> (i32, i32) {
    %c0_i32 = arith.constant 0 : i32
    %c0_i32_0 = arith.constant 0 : i32
    %c0_i32_1 = arith.constant 0 : i32
    return %c0_i32, %c0_i32_0 : i32, i32
  }
  func.func @transform_3(%arg0: i32) -> (i32, i32) {
    %c0_i32 = arith.constant 0 : i32
    %c0_i32_0 = arith.constant 0 : i32
    %c0_i32_1 = arith.constant 0 : i32
    return %c0_i32, %c0_i32_0 : i32, i32
  }
  func.func @transform_4(%arg0: i32) -> (i32, i32, i32, i32) {
    %c0_i32 = arith.constant 0 : i32
    %c0_i32_0 = arith.constant 0 : i32
    %c0_i32_1 = arith.constant 0 : i32
    %c0_i32_2 = arith.constant 0 : i32
    return %arg0, %c0_i32, %c0_i32_0, %c0_i32_1 : i32, i32, i32, i32
  }
}

</mosaic_0001>

<llo_original>
// kernel: tpu_custom_call.1
$region0: #{tpu_custom_call.1}
  #allocation0 [shape = 'u32[]', space=smem, size = 0x4, offset = 0x4, fixed_abs, tag = 'smem constant byte address 0x4 - core index']
  #allocation1 [shape = 'u32[144,128]{1,0:T(1,128)}', space=vmem, size = 0x12000, scoped, tag = 'internal scratch']
  #allocation2 [shape = 'f32[256,36]{1,0:T(8,128)}', space=vmem, size = 0x20000, scoped, tag = 'scratch operand']
  %s0 = inlined_call_operand.vmem [shape: f32[2,18,18,4], index: 0, kind: input, shape index: {}]
  %s1 = inlined_call_operand.vmem [shape: bf16[36,128], index: 1, kind: input, shape index: {}]
  %s2 = inlined_call_operand.vmem [shape: f32[1,128], index: 2, kind: input, shape index: {}]
  %s3 = inlined_call_operand.vmem [shape: f32[1,128], index: 3, kind: input, shape index: {}]
  %s4 = inlined_call_operand.hbm [shape: f32[2,16,16,128], index: 4, kind: output, shape index: {}]
  %s5 = sld [smem:[#allocation0]]
  $region49: #{tpu_custom_call.1} parent=0
    _
  %s7 = ssub.s32 1, %s5
  %s8 = scalar_select 0, %s7, %s5
  $region1: #{tpu_custom_call.1} parent=0
    #allocation3 [shape = 'u8[262144]{0}', space=vmem, size = 0x40000, scoped, tag = 'output window, operand 0']
    #allocation4 [shape = 's32[2]{0}', space=sflag, size = 0x8, scoped, tag = 'scoped memory for tpu_custom_call.1']
    %9 = vsyncpa [#allocation4], 0
    %s10 = scalar_lea.sflag [#allocation4], 1
    %11 = vsyncpa %s10, 0
    loop: start=0, step=1, limit=4
    $region2: #{tpu_custom_call.1} parent=1 // loop_pre_header
      _
    $region3: #{tpu_custom_call.1} parent=1 // loop_header
      %s13 = sphi 0, %s17
      %p14 = scmp.ge.s32.totalorder %s13, 4
      %s23 = sphi 0, %s25
      %s26 = sphi 0, %s23
      %s27 = sphi 0, %s26
      %s43 = sphi 0, %s27
      %s47 = sphi 0, %s47
      %s49 = sphi 0, %s47
      %s50 = sphi 0, %s49
      %s64 = sphi 0, %s50
      %s68 = sphi 0, %s68
      %s70 = sphi 0, %s68
      %s71 = sphi 0, %s70
      %s85 = sphi 0, %s71
      %s89 = sphi 0, %s89
      %s91 = sphi 0, %s89
      %s92 = sphi 0, %s91
      %s106 = sphi 0, %s92
      %s112 = sphi 0, %s114
      %s115 = sphi 0, %s112
      %s116 = sphi 0, %s115
      %s132 = sphi 0, %s116
    $region4: #{tpu_custom_call.1} parent=1 // loop_header_branch
      %16 = sbr.rel (%p14) target = $region8
    $region5: #{tpu_custom_call.1} parent=1 // loop_body
      %s18 = ssub.s32 %s13, 1
      %s19 = ssub.s32 %s13, 2
      %s20 = sadd.s32 %s13, 1
      %s21 = ssub.s32 %s13, %s20
      %p22 = scmp.eq.s32.totalorder %s21, 0
      %s24 = sadd.s32 %s23, 1
      %s25 = scalar_select %p22, %s23, %s24
      %p28 = pneg %p22
      %p29 = scmp.eq.s32.totalorder %s13, 1
      %p30 = por %p28, %p29
      %p31 = scmp.ne.s32.totalorder %s23, %s26
      %p32 = scmp.eq.s32.totalorder %s13, 0
      %p33 = por %p31, %p32
      %p34 = scmp.ne.s32.totalorder %s23, %s26
      %p35 = scmp.eq.s32.totalorder %s18, 1
      %p36 = por %p34, %p35
      %p37 = scmp.ne.s32.totalorder %s26, %s27
      %p38 = scmp.eq.s32.totalorder %s18, 0
      %p39 = por %p37, %p38
      %p40 = scmp.ne.s32.totalorder %s26, %s27
      %p41 = scmp.eq.s32.totalorder %s19, 1
      %p42 = por %p40, %p41
      %p44 = scmp.ne.s32.totalorder %s27, %s43
      %p45 = scmp.eq.s32.totalorder %s19, 0
      %p46 = por %p44, %p45
      %s48 = sadd.s32 %s47, 1
      %p51 = scmp.eq.s32.totalorder %s13, 1
      %p52 = scmp.ne.s32.totalorder %s47, %s49
      %p53 = scmp.eq.s32.totalorder %s13, 0
      %p54 = por %p52, %p53
      %p55 = scmp.ne.s32.totalorder %s47, %s49
      %p56 = scmp.eq.s32.totalorder %s18, 1
      %p57 = por %p55, %p56
      %p58 = scmp.ne.s32.totalorder %s49, %s50
      %p59 = scmp.eq.s32.totalorder %s18, 0
      %p60 = por %p58, %p59
      %p61 = scmp.ne.s32.totalorder %s49, %s50
      %p62 = scmp.eq.s32.totalorder %s19, 1
      %p63 = por %p61, %p62
      %p65 = scmp.ne.s32.totalorder %s50, %s64
      %p66 = scmp.eq.s32.totalorder %s19, 0
      %p67 = por %p65, %p66
      %s69 = sadd.s32 %s68, 1
      %p72 = scmp.eq.s32.totalorder %s13, 1
      %p73 = scmp.ne.s32.totalorder %s68, %s70
      %p74 = scmp.eq.s32.totalorder %s13, 0
      %p75 = por %p73, %p74
      %p76 = scmp.ne.s32.totalorder %s68, %s70
      %p77 = scmp.eq.s32.totalorder %s18, 1
      %p78 = por %p76, %p77
      %p79 = scmp.ne.s32.totalorder %s70, %s71
      %p80 = scmp.eq.s32.totalorder %s18, 0
      %p81 = por %p79, %p80
      %p82 = scmp.ne.s32.totalorder %s70, %s71
      %p83 = scmp.eq.s32.totalorder %s19, 1
      %p84 = por %p82, %p83
      %p86 = scmp.ne.s32.totalorder %s71, %s85
      %p87 = scmp.eq.s32.totalorder %s19, 0
      %p88 = por %p86, %p87
      %s90 = sadd.s32 %s89, 1
      %p93 = scmp.eq.s32.totalorder %s13, 1
      %p94 = scmp.ne.s32.totalorder %s89, %s91
      %p95 = scmp.eq.s32.totalorder %s13, 0
      %p96 = por %p94, %p95
      %p97 = scmp.ne.s32.totalorder %s89, %s91
      %p98 = scmp.eq.s32.totalorder %s18, 1
      %p99 = por %p97, %p98
      %p100 = scmp.ne.s32.totalorder %s91, %s92
      %p101 = scmp.eq.s32.totalorder %s18, 0
      %p102 = por %p100, %p101
      %p103 = scmp.ne.s32.totalorder %s91, %s92
      %p104 = scmp.eq.s32.totalorder %s19, 1
      %p105 = por %p103, %p104
      %p107 = scmp.ne.s32.totalorder %s92, %s106
      %p108 = scmp.eq.s32.totalorder %s19, 0
      %p109 = por %p107, %p108
      %s110 = ssub.s32 %s13, %s20
      %p111 = scmp.eq.s32.totalorder %s110, 0
      %s113 = sadd.s32 %s112, 1
      %s114 = scalar_select %p111, %s112, %s113
      %p117 = pneg %p111
      %p118 = scmp.eq.s32.totalorder %s13, 1
      %p119 = por %p117, %p118
      %p120 = scmp.ne.s32.totalorder %s112, %s115
      %p121 = scmp.eq.s32.totalorder %s13, 0
      %p122 = por %p120, %p121
      %p123 = scmp.ne.s32.totalorder %s112, %s115
      %p124 = scmp.eq.s32.totalorder %s18, 1
      %p125 = por %p123, %p124
      %p126 = scmp.ne.s32.totalorder %s115, %s116
      %p127 = scmp.eq.s32.totalorder %s18, 0
      %p128 = por %p126, %p127
      %p129 = scmp.ne.s32.totalorder %s115, %s116
      %p130 = scmp.eq.s32.totalorder %s19, 1
      %p131 = por %p129, %p130
      %p133 = scmp.ne.s32.totalorder %s116, %s132
      %p134 = scmp.eq.s32.totalorder %s19, 0
      %p135 = por %p133, %p134
      %p136 = scmp.le.s32.totalorder 1, %s13
      %p137 = scmp.lt.s32.totalorder %s13, 3
      %p138 = pnand %p136, %p137
      %p139 = pneg %p138
      // Predicated region
      $region9: #{tpu_custom_call.1} parent=5 // pred_check
        _
      $region10: #{tpu_custom_call.1} parent=5 // pred_check_branch
        %141 = sbr.rel (%p138) target = $region12
      $region11: #{tpu_custom_call.1} parent=5 // pred_region
        %s142 = ssub.s32 %s13, 1
        // Predicated region
        $region13: #{tpu_custom_call.1} parent=11 // pred_check
          %p143 = pneg %p60
        $region14: #{tpu_custom_call.1} parent=11 // pred_check_branch
          %145 = sbr.rel (%p143) target = $region16
        $region15: #{tpu_custom_call.1} parent=11 // pred_region
          _
        $region16: #{tpu_custom_call.1} parent=11 // pred_fallthru
          _
        // Predicated region
        $region17: #{tpu_custom_call.1} parent=11 // pred_check
          %p146 = pneg %p81
        $region18: #{tpu_custom_call.1} parent=11 // pred_check_branch
          %148 = sbr.rel (%p146) target = $region20
        $region19: #{tpu_custom_call.1} parent=11 // pred_region
          _
        $region20: #{tpu_custom_call.1} parent=11 // pred_fallthru
          _
        // Predicated region
        $region21: #{tpu_custom_call.1} parent=11 // pred_check
          %p149 = pneg %p102
        $region22: #{tpu_custom_call.1} parent=11 // pred_check_branch
          %151 = sbr.rel (%p149) target = $region24
        $region23: #{tpu_custom_call.1} parent=11 // pred_region
          _
        $region24: #{tpu_custom_call.1} parent=11 // pred_fallthru
          _
      $region12: #{tpu_custom_call.1} parent=5 // pred_fallthru
        _
      %p152 = scmp.lt.s32.totalorder %s13, 2
      // Predicated region
      $region25: #{tpu_custom_call.1} parent=5 // pred_check
        %p153 = pneg %p152
      $region26: #{tpu_custom_call.1} parent=5 // pred_check_branch
        %155 = sbr.rel (%p153) target = $region28
      $region27: #{tpu_custom_call.1} parent=5 // pred_region
        // Predicated region
        $region29: #{tpu_custom_call.1} parent=27 // pred_check
          %p156 = pneg %p33
        $region30: #{tpu_custom_call.1} parent=27 // pred_check_branch
          %158 = sbr.rel (%p156) target = $region32
        $region31: #{tpu_custom_call.1} parent=27 // pred_region
          %p159 = scmp.lt.s32.totalorder %s13, 1
          %s160 = scalar_select %p159, %s13, 1
          %s161 = smul.addr %s160, 54
          %s162 = smul.addr %s161, 8
          %s163 = scalar_lea.vmem %s0, %s162
        $region32: #{tpu_custom_call.1} parent=27 // pred_fallthru
          _
      $region28: #{tpu_custom_call.1} parent=5 // pred_fallthru
        _
      %p164 = scmp.le.s32.totalorder 1, %s13
      %p165 = scmp.lt.s32.totalorder %s13, 3
      %p166 = pnand %p164, %p165
      %p167 = pneg %p166
      // Predicated region
      $region33: #{tpu_custom_call.1} parent=5 // pred_check
        _
      $region34: #{tpu_custom_call.1} parent=5 // pred_check_branch
        %169 = sbr.rel (%p166) target = $region36
      $region35: #{tpu_custom_call.1} parent=5 // pred_region
        %s170 = ssub.s32 %s13, 1
        %p171 = scmp.lt.s32.totalorder %s18, 1
        %s172 = scalar_select %p171, %s18, 1
        %s173 = smul.addr %s172, 54
        %s174 = smul.addr %s173, 8
        %s175 = scalar_lea.vmem %s0, %s174
        %p176 = pneg %p39
        %p177 = pneg %p36
        %p178 = pneg %p60
        %p179 = pneg %p57
        %p180 = pneg %p81
        %p181 = pneg %p78
        %p182 = pneg %p102
        %p183 = pneg %p99
        %p184 = pneg %p128
        %p185 = pneg %p125
        %s186 = sand.u32 %s115, 1
        %s187 = scalar_lea.sflag [#allocation4], %s186
        %s188 = sand.u32 %s115, 1
        %s189 = smul.addr %s188, 256
        %s190 = scalar_lea.vmem [#allocation3], %s189
        %p191 = scmp.lt.s32.totalorder %s18, 1
        %s192 = scalar_select %p191, %s18, 1
        %s193 = smul.addr %s192, 54
        %s194 = smul.addr %s193, 8
        %s195 = scalar_lea.vmem %s0, %s194
        %v197 = vld [vmem:[%s195] sm:$0xff]
        %v198 = vld [vmem:[%s195 + $0x8] sm:$0xff]
        %v199 = vld [vmem:[%s195 + $0x10] sm:$0x3]
        %v200 = vld [vmem:[%s195 + $0x18] sm:$0xff]
        %v201 = vld [vmem:[%s195 + $0x20] sm:$0xff]
        %v202 = vld [vmem:[%s195 + $0x28] sm:$0x3]
        %v203 = vld [vmem:[%s195 + $0x30] sm:$0xff]
        %v204 = vld [vmem:[%s195 + $0x38] sm:$0xff]
        %v205 = vld [vmem:[%s195 + $0x40] sm:$0x3]
        %v206 = vld [vmem:[%s195 + $0x48] sm:$0xff]
        %v207 = vld [vmem:[%s195 + $0x50] sm:$0xff]
        %v208 = vld [vmem:[%s195 + $0x58] sm:$0x3]
        %v209 = vld [vmem:[%s195 + $0x60] sm:$0xff]
        %v210 = vld [vmem:[%s195 + $0x68] sm:$0xff]
        %v211 = vld [vmem:[%s195 + $0x70] sm:$0x3]
        %v212 = vld [vmem:[%s195 + $0x78] sm:$0xff]
        %v213 = vld [vmem:[%s195 + $0x80] sm:$0xff]
        %v214 = vld [vmem:[%s195 + $0x88] sm:$0x3]
        %v215 = vld [vmem:[%s195 + $0x90] sm:$0xff]
        %v216 = vld [vmem:[%s195 + $0x98] sm:$0xff]
        %v217 = vld [vmem:[%s195 + $0xa0] sm:$0x3]
        %v218 = vld [vmem:[%s195 + $0xa8] sm:$0xff]
        %v219 = vld [vmem:[%s195 + $0xb0] sm:$0xff]
        %v220 = vld [vmem:[%s195 + $0xb8] sm:$0x3]
        %v221 = vld [vmem:[%s195 + $0xc0] sm:$0xff]
        %v222 = vld [vmem:[%s195 + $0xc8] sm:$0xff]
        %v223 = vld [vmem:[%s195 + $0xd0] sm:$0x3]
        %v224 = vld [vmem:[%s195 + $0xd8] sm:$0xff]
        %v225 = vld [vmem:[%s195 + $0xe0] sm:$0xff]
        %v226 = vld [vmem:[%s195 + $0xe8] sm:$0x3]
        %v227 = vld [vmem:[%s195 + $0xf0] sm:$0xff]
        %v228 = vld [vmem:[%s195 + $0xf8] sm:$0xff]
        %v229 = vld [vmem:[%s195 + $0x100] sm:$0x3]
        %v230 = vld [vmem:[%s195 + $0x108] sm:$0xff]
        %v231 = vld [vmem:[%s195 + $0x110] sm:$0xff]
        %v232 = vld [vmem:[%s195 + $0x118] sm:$0x3]
        %v233 = vld [vmem:[%s195 + $0x120] sm:$0xff]
        %v234 = vld [vmem:[%s195 + $0x128] sm:$0xff]
        %v235 = vld [vmem:[%s195 + $0x130] sm:$0x3]
        %v236 = vld [vmem:[%s195 + $0x138] sm:$0xff]
        %v237 = vld [vmem:[%s195 + $0x140] sm:$0xff]
        %v238 = vld [vmem:[%s195 + $0x148] sm:$0x3]
        %v239 = vld [vmem:[%s195 + $0x150] sm:$0xff]
        %v240 = vld [vmem:[%s195 + $0x158] sm:$0xff]
        %v241 = vld [vmem:[%s195 + $0x160] sm:$0x3]
        %v242 = vld [vmem:[%s195 + $0x168] sm:$0xff]
        %v243 = vld [vmem:[%s195 + $0x170] sm:$0xff]
        %v244 = vld [vmem:[%s195 + $0x178] sm:$0x3]
        %v245 = vld [vmem:[%s195 + $0x180] sm:$0xff]
        %v246 = vld [vmem:[%s195 + $0x188] sm:$0xff]
        %v247 = vld [vmem:[%s195 + $0x190] sm:$0x3]
        %v248 = vld [vmem:[%s195 + $0x198] sm:$0xff]
        %v249 = vld [vmem:[%s195 + $0x1a0] sm:$0xff]
        %v250 = vld [vmem:[%s195 + $0x1a8] sm:$0x3]
        %vm251 = vcmask 31744
        %252 = vst.msk [vmem:[#allocation2] sm:$0xff] %vm251, %v197
        %253 = vst.msk [vmem:[#allocation2 + $0x8] sm:$0xff] %vm251, %v198
        %254 = vst.msk [vmem:[#allocation2 + $0x10] sm:$0xff] %vm251, %v200
        %255 = vst.msk [vmem:[#allocation2 + $0x18] sm:$0xff] %vm251, %v201
        %256 = vst.msk [vmem:[#allocation2 + $0x20] sm:$0xff] %vm251, %v203
        %257 = vst.msk [vmem:[#allocation2 + $0x28] sm:$0xff] %vm251, %v204
        %258 = vst.msk [vmem:[#allocation2 + $0x30] sm:$0xff] %vm251, %v206
        %259 = vst.msk [vmem:[#allocation2 + $0x38] sm:$0xff] %vm251, %v207
        %260 = vst.msk [vmem:[#allocation2 + $0x40] sm:$0xff] %vm251, %v209
        %261 = vst.msk [vmem:[#allocation2 + $0x48] sm:$0xff] %vm251, %v210
        %262 = vst.msk [vmem:[#allocation2 + $0x50] sm:$0xff] %vm251, %v212
        %263 = vst.msk [vmem:[#allocation2 + $0x58] sm:$0xff] %vm251, %v213
        %264 = vst.msk [vmem:[#allocation2 + $0x60] sm:$0xff] %vm251, %v215
        %265 = vst.msk [vmem:[#allocation2 + $0x68] sm:$0xff] %vm251, %v216
        %266 = vst.msk [vmem:[#allocation2 + $0x70] sm:$0xff] %vm251, %v218
        %267 = vst.msk [vmem:[#allocation2 + $0x78] sm:$0xff] %vm251, %v219
        %268 = vst.msk [vmem:[#allocation2 + $0x80] sm:$0xff] %vm251, %v221
        %269 = vst.msk [vmem:[#allocation2 + $0x88] sm:$0xff] %vm251, %v222
        %270 = vst.msk [vmem:[#allocation2 + $0x90] sm:$0xff] %vm251, %v224
        %271 = vst.msk [vmem:[#allocation2 + $0x98] sm:$0xff] %vm251, %v225
        %272 = vst.msk [vmem:[#allocation2 + $0xa0] sm:$0xff] %vm251, %v227
        %273 = vst.msk [vmem:[#allocation2 + $0xa8] sm:$0xff] %vm251, %v228
        %274 = vst.msk [vmem:[#allocation2 + $0xb0] sm:$0xff] %vm251, %v230
        %275 = vst.msk [vmem:[#allocation2 + $0xb8] sm:$0xff] %vm251, %v231
        %276 = vst.msk [vmem:[#allocation2 + $0xc0] sm:$0xff] %vm251, %v233
        %277 = vst.msk [vmem:[#allocation2 + $0xc8] sm:$0xff] %vm251, %v234
        %278 = vst.msk [vmem:[#allocation2 + $0xd0] sm:$0xff] %vm251, %v236
        %279 = vst.msk [vmem:[#allocation2 + $0xd8] sm:$0xff] %vm251, %v237
        %280 = vst.msk [vmem:[#allocation2 + $0xe0] sm:$0xff] %vm251, %v239
        %281 = vst.msk [vmem:[#allocation2 + $0xe8] sm:$0xff] %vm251, %v240
        %282 = vst.msk [vmem:[#allocation2 + $0xf0] sm:$0xff] %vm251, %v242
        %283 = vst.msk [vmem:[#allocation2 + $0xf8] sm:$0xff] %vm251, %v243
        %vm332 = vcmask 1046528
        %v333 = vrot.slane %v197, 1
        %v334 = vrot.slane %v198, 1
        %v335 = vsel %vm332, %v333, %v334
        %v336 = vrot.slane %v199, 1
        %v337 = vsel %vm332, %v334, %v336
        %v338 = vrot.slane %v200, 1
        %v339 = vrot.slane %v201, 1
        %v340 = vsel %vm332, %v338, %v339
        %v341 = vrot.slane %v202, 1
        %v342 = vsel %vm332, %v339, %v341
        %v343 = vrot.slane %v203, 1
        %v344 = vrot.slane %v204, 1
        %v345 = vsel %vm332, %v343, %v344
        %v346 = vrot.slane %v205, 1
        %v347 = vsel %vm332, %v344, %v346
        %v348 = vrot.slane %v206, 1
        %v349 = vrot.slane %v207, 1
        %v350 = vsel %vm332, %v348, %v349
        %v351 = vrot.slane %v208, 1
        %v352 = vsel %vm332, %v349, %v351
        %v353 = vrot.slane %v209, 1
        %v354 = vrot.slane %v210, 1
        %v355 = vsel %vm332, %v353, %v354
        %v356 = vrot.slane %v211, 1
        %v357 = vsel %vm332, %v354, %v356
        %v358 = vrot.slane %v212, 1
        %v359 = vrot.slane %v213, 1
        %v360 = vsel %vm332, %v358, %v359
        %v361 = vrot.slane %v214, 1
        %v362 = vsel %vm332, %v359, %v361
        %v363 = vrot.slane %v215, 1
        %v364 = vrot.slane %v216, 1
        %v365 = vsel %vm332, %v363, %v364
        %v366 = vrot.slane %v217, 1
        %v367 = vsel %vm332, %v364, %v366
        %v368 = vrot.slane %v218, 1
        %v369 = vrot.slane %v219, 1
        %v370 = vsel %vm332, %v368, %v369
        %v371 = vrot.slane %v220, 1
        %v372 = vsel %vm332, %v369, %v371
        %v373 = vrot.slane %v221, 1
        %v374 = vrot.slane %v222, 1
        %v375 = vsel %vm332, %v373, %v374
        %v376 = vrot.slane %v223, 1
        %v377 = vsel %vm332, %v374, %v376
        %v378 = vrot.slane %v224, 1
        %v379 = vrot.slane %v225, 1
        %v380 = vsel %vm332, %v378, %v379
        %v381 = vrot.slane %v226, 1
        %v382 = vsel %vm332, %v379, %v381
        %v383 = vrot.slane %v227, 1
        %v384 = vrot.slane %v228, 1
        %v385 = vsel %vm332, %v383, %v384
        %v386 = vrot.slane %v229, 1
        %v387 = vsel %vm332, %v384, %v386
        %v388 = vrot.slane %v230, 1
        %v389 = vrot.slane %v231, 1
        %v390 = vsel %vm332, %v388, %v389
        %v391 = vrot.slane %v232, 1
        %v392 = vsel %vm332, %v389, %v391
        %v393 = vrot.slane %v233, 1
        %v394 = vrot.slane %v234, 1
        %v395 = vsel %vm332, %v393, %v394
        %v396 = vrot.slane %v235, 1
        %v397 = vsel %vm332, %v394, %v396
        %v398 = vrot.slane %v236, 1
        %v399 = vrot.slane %v237, 1
        %v400 = vsel %vm332, %v398, %v399
        %v401 = vrot.slane %v238, 1
        %v402 = vsel %vm332, %v399, %v401
        %v403 = vrot.slane %v239, 1
        %v404 = vrot.slane %v240, 1
        %v405 = vsel %vm332, %v403, %v404
        %v406 = vrot.slane %v241, 1
        %v407 = vsel %vm332, %v404, %v406
        %v408 = vrot.slane %v242, 1
        %v409 = vrot.slane %v243, 1
        %v410 = vsel %vm332, %v408, %v409
        %v411 = vrot.slane %v244, 1
        %v412 = vsel %vm332, %v409, %v411
        %413 = vrot.lane.b32.xlu0 %v335, 4
        %v414 = vpop.permute.xlu0 %413
        %415 = vrot.lane.b32.xlu0 %v337, 4
        %v416 = vpop.permute.xlu0 %415
        %417 = vrot.lane.b32.xlu0 %v340, 4
        %v418 = vpop.permute.xlu0 %417
        %419 = vrot.lane.b32.xlu0 %v342, 4
        %v420 = vpop.permute.xlu0 %419
        %421 = vrot.lane.b32.xlu0 %v345, 4
        %v422 = vpop.permute.xlu0 %421
        %423 = vrot.lane.b32.xlu0 %v347, 4
        %v424 = vpop.permute.xlu0 %423
        %425 = vrot.lane.b32.xlu0 %v350, 4
        %v426 = vpop.permute.xlu0 %425
        %427 = vrot.lane.b32.xlu0 %v352, 4
        %v428 = vpop.permute.xlu0 %427
        %429 = vrot.lane.b32.xlu0 %v355, 4
        %v430 = vpop.permute.xlu0 %429
        %431 = vrot.lane.b32.xlu0 %v357, 4
        %v432 = vpop.permute.xlu0 %431
        %433 = vrot.lane.b32.xlu0 %v360, 4
        %v434 = vpop.permute.xlu0 %433
        %435 = vrot.lane.b32.xlu0 %v362, 4
        %v436 = vpop.permute.xlu0 %435
        %437 = vrot.lane.b32.xlu0 %v365, 4
        %v438 = vpop.permute.xlu0 %437
        %439 = vrot.lane.b32.xlu0 %v367, 4
        %v440 = vpop.permute.xlu0 %439
        %441 = vrot.lane.b32.xlu0 %v370, 4
        %v442 = vpop.permute.xlu0 %441
        %443 = vrot.lane.b32.xlu0 %v372, 4
        %v444 = vpop.permute.xlu0 %443
        %445 = vrot.lane.b32.xlu0 %v375, 4
        %v446 = vpop.permute.xlu0 %445
        %447 = vrot.lane.b32.xlu0 %v377, 4
        %v448 = vpop.permute.xlu0 %447
        %449 = vrot.lane.b32.xlu0 %v380, 4
        %v450 = vpop.permute.xlu0 %449
        %451 = vrot.lane.b32.xlu0 %v382, 4
        %v452 = vpop.permute.xlu0 %451
        %453 = vrot.lane.b32.xlu0 %v385, 4
        %v454 = vpop.permute.xlu0 %453
        %455 = vrot.lane.b32.xlu0 %v387, 4
        %v456 = vpop.permute.xlu0 %455
        %457 = vrot.lane.b32.xlu0 %v390, 4
        %v458 = vpop.permute.xlu0 %457
        %459 = vrot.lane.b32.xlu0 %v392, 4
        %v460 = vpop.permute.xlu0 %459
        %461 = vrot.lane.b32.xlu0 %v395, 4
        %v462 = vpop.permute.xlu0 %461
        %463 = vrot.lane.b32.xlu0 %v397, 4
        %v464 = vpop.permute.xlu0 %463
        %465 = vrot.lane.b32.xlu0 %v400, 4
        %v466 = vpop.permute.xlu0 %465
        %467 = vrot.lane.b32.xlu0 %v402, 4
        %v468 = vpop.permute.xlu0 %467
        %469 = vrot.lane.b32.xlu0 %v405, 4
        %v470 = vpop.permute.xlu0 %469
        %471 = vrot.lane.b32.xlu0 %v407, 4
        %v472 = vpop.permute.xlu0 %471
        %473 = vrot.lane.b32.xlu0 %v410, 4
        %v474 = vpop.permute.xlu0 %473
        %475 = vrot.lane.b32.xlu0 %v412, 4
        %v476 = vpop.permute.xlu0 %475
        %vm509 = vcmask 64544
        %510 = vst.msk [vmem:[#allocation2] sm:$0xff] %vm509, %v414
        %511 = vst.msk [vmem:[#allocation2 + $0x8] sm:$0xff] %vm509, %v416
        %512 = vst.msk [vmem:[#allocation2 + $0x10] sm:$0xff] %vm509, %v418
        %513 = vst.msk [vmem:[#allocation2 + $0x18] sm:$0xff] %vm509, %v420
        %514 = vst.msk [vmem:[#allocation2 + $0x20] sm:$0xff] %vm509, %v422
        %515 = vst.msk [vmem:[#allocation2 + $0x28] sm:$0xff] %vm509, %v424
        %516 = vst.msk [vmem:[#allocation2 + $0x30] sm:$0xff] %vm509, %v426
        %517 = vst.msk [vmem:[#allocation2 + $0x38] sm:$0xff] %vm509, %v428
        %518 = vst.msk [vmem:[#allocation2 + $0x40] sm:$0xff] %vm509, %v430
        %519 = vst.msk [vmem:[#allocation2 + $0x48] sm:$0xff] %vm509, %v432
        %520 = vst.msk [vmem:[#allocation2 + $0x50] sm:$0xff] %vm509, %v434
        %521 = vst.msk [vmem:[#allocation2 + $0x58] sm:$0xff] %vm509, %v436
        %522 = vst.msk [vmem:[#allocation2 + $0x60] sm:$0xff] %vm509, %v438
        %523 = vst.msk [vmem:[#allocation2 + $0x68] sm:$0xff] %vm509, %v440
        %524 = vst.msk [vmem:[#allocation2 + $0x70] sm:$0xff] %vm509, %v442
        %525 = vst.msk [vmem:[#allocation2 + $0x78] sm:$0xff] %vm509, %v444
        %526 = vst.msk [vmem:[#allocation2 + $0x80] sm:$0xff] %vm509, %v446
        %527 = vst.msk [vmem:[#allocation2 + $0x88] sm:$0xff] %vm509, %v448
        %528 = vst.msk [vmem:[#allocation2 + $0x90] sm:$0xff] %vm509, %v450
        %529 = vst.msk [vmem:[#allocation2 + $0x98] sm:$0xff] %vm509, %v452
        %530 = vst.msk [vmem:[#allocation2 + $0xa0] sm:$0xff] %vm509, %v454
        %531 = vst.msk [vmem:[#allocation2 + $0xa8] sm:$0xff] %vm509, %v456
        %532 = vst.msk [vmem:[#allocation2 + $0xb0] sm:$0xff] %vm509, %v458
        %533 = vst.msk [vmem:[#allocation2 + $0xb8] sm:$0xff] %vm509, %v460
        %534 = vst.msk [vmem:[#allocation2 + $0xc0] sm:$0xff] %vm509, %v462
        %535 = vst.msk [vmem:[#allocation2 + $0xc8] sm:$0xff] %vm509, %v464
        %536 = vst.msk [vmem:[#allocation2 + $0xd0] sm:$0xff] %vm509, %v466
        %537 = vst.msk [vmem:[#allocation2 + $0xd8] sm:$0xff] %vm509, %v468
        %538 = vst.msk [vmem:[#allocation2 + $0xe0] sm:$0xff] %vm509, %v470
        %539 = vst.msk [vmem:[#allocation2 + $0xe8] sm:$0xff] %vm509, %v472
        %540 = vst.msk [vmem:[#allocation2 + $0xf0] sm:$0xff] %vm509, %v474
        %541 = vst.msk [vmem:[#allocation2 + $0xf8] sm:$0xff] %vm509, %v476
        %vm542 = vcmask 1045504
        %v543 = vrot.slane %v197, 2
        %v544 = vrot.slane %v198, 2
        %v545 = vsel %vm542, %v543, %v544
        %v546 = vrot.slane %v199, 2
        %v547 = vsel %vm542, %v544, %v546
        %v548 = vrot.slane %v200, 2
        %v549 = vrot.slane %v201, 2
        %v550 = vsel %vm542, %v548, %v549
        %v551 = vrot.slane %v202, 2
        %v552 = vsel %vm542, %v549, %v551
        %v553 = vrot.slane %v203, 2
        %v554 = vrot.slane %v204, 2
        %v555 = vsel %vm542, %v553, %v554
        %v556 = vrot.slane %v205, 2
        %v557 = vsel %vm542, %v554, %v556
        %v558 = vrot.slane %v206, 2
        %v559 = vrot.slane %v207, 2
        %v560 = vsel %vm542, %v558, %v559
        %v561 = vrot.slane %v208, 2
        %v562 = vsel %vm542, %v559, %v561
        %v563 = vrot.slane %v209, 2
        %v564 = vrot.slane %v210, 2
        %v565 = vsel %vm542, %v563, %v564
        %v566 = vrot.slane %v211, 2
        %v567 = vsel %vm542, %v564, %v566
        %v568 = vrot.slane %v212, 2
        %v569 = vrot.slane %v213, 2
        %v570 = vsel %vm542, %v568, %v569
        %v571 = vrot.slane %v214, 2
        %v572 = vsel %vm542, %v569, %v571
        %v573 = vrot.slane %v215, 2
        %v574 = vrot.slane %v216, 2
        %v575 = vsel %vm542, %v573, %v574
        %v576 = vrot.slane %v217, 2
        %v577 = vsel %vm542, %v574, %v576
        %v578 = vrot.slane %v218, 2
        %v579 = vrot.slane %v219, 2
        %v580 = vsel %vm542, %v578, %v579
        %v581 = vrot.slane %v220, 2
        %v582 = vsel %vm542, %v579, %v581
        %v583 = vrot.slane %v221, 2
        %v584 = vrot.slane %v222, 2
        %v585 = vsel %vm542, %v583, %v584
        %v586 = vrot.slane %v223, 2
        %v587 = vsel %vm542, %v584, %v586
        %v588 = vrot.slane %v224, 2
        %v589 = vrot.slane %v225, 2
        %v590 = vsel %vm542, %v588, %v589
        %v591 = vrot.slane %v226, 2
        %v592 = vsel %vm542, %v589, %v591
        %v593 = vrot.slane %v227, 2
        %v594 = vrot.slane %v228, 2
        %v595 = vsel %vm542, %v593, %v594
        %v596 = vrot.slane %v229, 2
        %v597 = vsel %vm542, %v594, %v596
        %v598 = vrot.slane %v230, 2
        %v599 = vrot.slane %v231, 2
        %v600 = vsel %vm542, %v598, %v599
        %v601 = vrot.slane %v232, 2
        %v602 = vsel %vm542, %v599, %v601
        %v603 = vrot.slane %v233, 2
        %v604 = vrot.slane %v234, 2
        %v605 = vsel %vm542, %v603, %v604
        %v606 = vrot.slane %v235, 2
        %v607 = vsel %vm542, %v604, %v606
        %v608 = vrot.slane %v236, 2
        %v609 = vrot.slane %v237, 2
        %v610 = vsel %vm542, %v608, %v609
        %v611 = vrot.slane %v238, 2
        %v612 = vsel %vm542, %v609, %v611
        %v613 = vrot.slane %v239, 2
        %v614 = vrot.slane %v240, 2
        %v615 = vsel %vm542, %v613, %v614
        %v616 = vrot.slane %v241, 2
        %v617 = vsel %vm542, %v614, %v616
        %v618 = vrot.slane %v242, 2
        %v619 = vrot.slane %v243, 2
        %v620 = vsel %vm542, %v618, %v619
        %v621 = vrot.slane %v244, 2
        %v622 = vsel %vm542, %v619, %v621
        %623 = vrot.lane.b32.xlu0 %v545, 8
        %v624 = vpop.permute.xlu0 %623
        %625 = vrot.lane.b32.xlu0 %v547, 8
        %v626 = vpop.permute.xlu0 %625
        %627 = vrot.lane.b32.xlu0 %v550, 8
        %v628 = vpop.permute.xlu0 %627
        %629 = vrot.lane.b32.xlu0 %v552, 8
        %v630 = vpop.permute.xlu0 %629
        %631 = vrot.lane.b32.xlu0 %v555, 8
        %v632 = vpop.permute.xlu0 %631
        %633 = vrot.lane.b32.xlu0 %v557, 8
        %v634 = vpop.permute.xlu0 %633
        %635 = vrot.lane.b32.xlu0 %v560, 8
        %v636 = vpop.permute.xlu0 %635
        %637 = vrot.lane.b32.xlu0 %v562, 8
        %v638 = vpop.permute.xlu0 %637
        %639 = vrot.lane.b32.xlu0 %v565, 8
        %v640 = vpop.permute.xlu0 %639
        %641 = vrot.lane.b32.xlu0 %v567, 8
        %v642 = vpop.permute.xlu0 %641
        %643 = vrot.lane.b32.xlu0 %v570, 8
        %v644 = vpop.permute.xlu0 %643
        %645 = vrot.lane.b32.xlu0 %v572, 8
        %v646 = vpop.permute.xlu0 %645
        %647 = vrot.lane.b32.xlu0 %v575, 8
        %v648 = vpop.permute.xlu0 %647
        %649 = vrot.lane.b32.xlu0 %v577, 8
        %v650 = vpop.permute.xlu0 %649
        %651 = vrot.lane.b32.xlu0 %v580, 8
        %v652 = vpop.permute.xlu0 %651
        %653 = vrot.lane.b32.xlu0 %v582, 8
        %v654 = vpop.permute.xlu0 %653
        %655 = vrot.lane.b32.xlu0 %v585, 8
        %v656 = vpop.permute.xlu0 %655
        %657 = vrot.lane.b32.xlu0 %v587, 8
        %v658 = vpop.permute.xlu0 %657
        %659 = vrot.lane.b32.xlu0 %v590, 8
        %v660 = vpop.permute.xlu0 %659
        %661 = vrot.lane.b32.xlu0 %v592, 8
        %v662 = vpop.permute.xlu0 %661
        %663 = vrot.lane.b32.xlu0 %v595, 8
        %v664 = vpop.permute.xlu0 %663
        %665 = vrot.lane.b32.xlu0 %v597, 8
        %v666 = vpop.permute.xlu0 %665
        %667 = vrot.lane.b32.xlu0 %v600, 8
        %v668 = vpop.permute.xlu0 %667
        %669 = vrot.lane.b32.xlu0 %v602, 8
        %v670 = vpop.permute.xlu0 %669
        %671 = vrot.lane.b32.xlu0 %v605, 8
        %v672 = vpop.permute.xlu0 %671
        %673 = vrot.lane.b32.xlu0 %v607, 8
        %v674 = vpop.permute.xlu0 %673
        %675 = vrot.lane.b32.xlu0 %v610, 8
        %v676 = vpop.permute.xlu0 %675
        %677 = vrot.lane.b32.xlu0 %v612, 8
        %v678 = vpop.permute.xlu0 %677
        %679 = vrot.lane.b32.xlu0 %v615, 8
        %v680 = vpop.permute.xlu0 %679
        %681 = vrot.lane.b32.xlu0 %v617, 8
        %v682 = vpop.permute.xlu0 %681
        %683 = vrot.lane.b32.xlu0 %v620, 8
        %v684 = vpop.permute.xlu0 %683
        %685 = vrot.lane.b32.xlu0 %v622, 8
        %v686 = vpop.permute.xlu0 %685
        %vm719 = vcmask 97344
        %720 = vst.msk [vmem:[#allocation2] sm:$0xff] %vm719, %v624
        %721 = vst.msk [vmem:[#allocation2 + $0x8] sm:$0xff] %vm719, %v626
        %722 = vst.msk [vmem:[#allocation2 + $0x10] sm:$0xff] %vm719, %v628
        %723 = vst.msk [vmem:[#allocation2 + $0x18] sm:$0xff] %vm719, %v630
        %724 = vst.msk [vmem:[#allocation2 + $0x20] sm:$0xff] %vm719, %v632
        %725 = vst.msk [vmem:[#allocation2 + $0x28] sm:$0xff] %vm719, %v634
        %726 = vst.msk [vmem:[#allocation2 + $0x30] sm:$0xff] %vm719, %v636
        %727 = vst.msk [vmem:[#allocation2 + $0x38] sm:$0xff] %vm719, %v638
        %728 = vst.msk [vmem:[#allocation2 + $0x40] sm:$0xff] %vm719, %v640
        %729 = vst.msk [vmem:[#allocation2 + $0x48] sm:$0xff] %vm719, %v642
        %730 = vst.msk [vmem:[#allocation2 + $0x50] sm:$0xff] %vm719, %v644
        %731 = vst.msk [vmem:[#allocation2 + $0x58] sm:$0xff] %vm719, %v646
        %732 = vst.msk [vmem:[#allocation2 + $0x60] sm:$0xff] %vm719, %v648
        %733 = vst.msk [vmem:[#allocation2 + $0x68] sm:$0xff] %vm719, %v650
        %734 = vst.msk [vmem:[#allocation2 + $0x70] sm:$0xff] %vm719, %v652
        %735 = vst.msk [vmem:[#allocation2 + $0x78] sm:$0xff] %vm719, %v654
        %736 = vst.msk [vmem:[#allocation2 + $0x80] sm:$0xff] %vm719, %v656
        %737 = vst.msk [vmem:[#allocation2 + $0x88] sm:$0xff] %vm719, %v658
        %738 = vst.msk [vmem:[#allocation2 + $0x90] sm:$0xff] %vm719, %v660
        %739 = vst.msk [vmem:[#allocation2 + $0x98] sm:$0xff] %vm719, %v662
        %740 = vst.msk [vmem:[#allocation2 + $0xa0] sm:$0xff] %vm719, %v664
        %741 = vst.msk [vmem:[#allocation2 + $0xa8] sm:$0xff] %vm719, %v666
        %742 = vst.msk [vmem:[#allocation2 + $0xb0] sm:$0xff] %vm719, %v668
        %743 = vst.msk [vmem:[#allocation2 + $0xb8] sm:$0xff] %vm719, %v670
        %744 = vst.msk [vmem:[#allocation2 + $0xc0] sm:$0xff] %vm719, %v672
        %745 = vst.msk [vmem:[#allocation2 + $0xc8] sm:$0xff] %vm719, %v674
        %746 = vst.msk [vmem:[#allocation2 + $0xd0] sm:$0xff] %vm719, %v676
        %747 = vst.msk [vmem:[#allocation2 + $0xd8] sm:$0xff] %vm719, %v678
        %748 = vst.msk [vmem:[#allocation2 + $0xe0] sm:$0xff] %vm719, %v680
        %749 = vst.msk [vmem:[#allocation2 + $0xe8] sm:$0xff] %vm719, %v682
        %750 = vst.msk [vmem:[#allocation2 + $0xf0] sm:$0xff] %vm719, %v684
        %751 = vst.msk [vmem:[#allocation2 + $0xf8] sm:$0xff] %vm719, %v686
        %754 = vrot.lane.b32.xlu0 %v200, 12
        %v755 = vpop.permute.xlu0 %754
        %756 = vrot.lane.b32.xlu0 %v201, 12
        %v757 = vpop.permute.xlu0 %756
        %758 = vrot.lane.b32.xlu0 %v203, 12
        %v759 = vpop.permute.xlu0 %758
        %760 = vrot.lane.b32.xlu0 %v204, 12
        %v761 = vpop.permute.xlu0 %760
        %762 = vrot.lane.b32.xlu0 %v206, 12
        %v763 = vpop.permute.xlu0 %762
        %764 = vrot.lane.b32.xlu0 %v207, 12
        %v765 = vpop.permute.xlu0 %764
        %766 = vrot.lane.b32.xlu0 %v209, 12
        %v767 = vpop.permute.xlu0 %766
        %768 = vrot.lane.b32.xlu0 %v210, 12
        %v769 = vpop.permute.xlu0 %768
        %770 = vrot.lane.b32.xlu0 %v212, 12
        %v771 = vpop.permute.xlu0 %770
        %772 = vrot.lane.b32.xlu0 %v213, 12
        %v773 = vpop.permute.xlu0 %772
        %774 = vrot.lane.b32.xlu0 %v215, 12
        %v775 = vpop.permute.xlu0 %774
        %776 = vrot.lane.b32.xlu0 %v216, 12
        %v777 = vpop.permute.xlu0 %776
        %778 = vrot.lane.b32.xlu0 %v218, 12
        %v779 = vpop.permute.xlu0 %778
        %780 = vrot.lane.b32.xlu0 %v219, 12
        %v781 = vpop.permute.xlu0 %780
        %782 = vrot.lane.b32.xlu0 %v221, 12
        %v783 = vpop.permute.xlu0 %782
        %784 = vrot.lane.b32.xlu0 %v222, 12
        %v785 = vpop.permute.xlu0 %784
        %786 = vrot.lane.b32.xlu0 %v224, 12
        %v787 = vpop.permute.xlu0 %786
        %788 = vrot.lane.b32.xlu0 %v225, 12
        %v789 = vpop.permute.xlu0 %788
        %790 = vrot.lane.b32.xlu0 %v227, 12
        %v791 = vpop.permute.xlu0 %790
        %792 = vrot.lane.b32.xlu0 %v228, 12
        %v793 = vpop.permute.xlu0 %792
        %794 = vrot.lane.b32.xlu0 %v230, 12
        %v795 = vpop.permute.xlu0 %794
        %796 = vrot.lane.b32.xlu0 %v231, 12
        %v797 = vpop.permute.xlu0 %796
        %798 = vrot.lane.b32.xlu0 %v233, 12
        %v799 = vpop.permute.xlu0 %798
        %800 = vrot.lane.b32.xlu0 %v234, 12
        %v801 = vpop.permute.xlu0 %800
        %802 = vrot.lane.b32.xlu0 %v236, 12
        %v803 = vpop.permute.xlu0 %802
        %804 = vrot.lane.b32.xlu0 %v237, 12
        %v805 = vpop.permute.xlu0 %804
        %806 = vrot.lane.b32.xlu0 %v239, 12
        %v807 = vpop.permute.xlu0 %806
        %808 = vrot.lane.b32.xlu0 %v240, 12
        %v809 = vpop.permute.xlu0 %808
        %810 = vrot.lane.b32.xlu0 %v242, 12
        %v811 = vpop.permute.xlu0 %810
        %812 = vrot.lane.b32.xlu0 %v243, 12
        %v813 = vpop.permute.xlu0 %812
        %814 = vrot.lane.b32.xlu0 %v245, 12
        %v815 = vpop.permute.xlu0 %814
        %816 = vrot.lane.b32.xlu0 %v246, 12
        %v817 = vpop.permute.xlu0 %816
        %vm850 = vcmask 130144
        %851 = vst.msk [vmem:[#allocation2] sm:$0xff] %vm850, %v755
        %852 = vst.msk [vmem:[#allocation2 + $0x8] sm:$0xff] %vm850, %v757
        %853 = vst.msk [vmem:[#allocation2 + $0x10] sm:$0xff] %vm850, %v759
        %854 = vst.msk [vmem:[#allocation2 + $0x18] sm:$0xff] %vm850, %v761
        %855 = vst.msk [vmem:[#allocation2 + $0x20] sm:$0xff] %vm850, %v763
        %856 = vst.msk [vmem:[#allocation2 + $0x28] sm:$0xff] %vm850, %v765
        %857 = vst.msk [vmem:[#allocation2 + $0x30] sm:$0xff] %vm850, %v767
        %858 = vst.msk [vmem:[#allocation2 + $0x38] sm:$0xff] %vm850, %v769
        %859 = vst.msk [vmem:[#allocation2 + $0x40] sm:$0xff] %vm850, %v771
        %860 = vst.msk [vmem:[#allocation2 + $0x48] sm:$0xff] %vm850, %v773
        %861 = vst.msk [vmem:[#allocation2 + $0x50] sm:$0xff] %vm850, %v775
        %862 = vst.msk [vmem:[#allocation2 + $0x58] sm:$0xff] %vm850, %v777
        %863 = vst.msk [vmem:[#allocation2 + $0x60] sm:$0xff] %vm850, %v779
        %864 = vst.msk [vmem:[#allocation2 + $0x68] sm:$0xff] %vm850, %v781
        %865 = vst.msk [vmem:[#allocation2 + $0x70] sm:$0xff] %vm850, %v783
        %866 = vst.msk [vmem:[#allocation2 + $0x78] sm:$0xff] %vm850, %v785
        %867 = vst.msk [vmem:[#allocation2 + $0x80] sm:$0xff] %vm850, %v787
        %868 = vst.msk [vmem:[#allocation2 + $0x88] sm:$0xff] %vm850, %v789
        %869 = vst.msk [vmem:[#allocation2 + $0x90] sm:$0xff] %vm850, %v791
        %870 = vst.msk [vmem:[#allocation2 + $0x98] sm:$0xff] %vm850, %v793
        %871 = vst.msk [vmem:[#allocation2 + $0xa0] sm:$0xff] %vm850, %v795
        %872 = vst.msk [vmem:[#allocation2 + $0xa8] sm:$0xff] %vm850, %v797
        %873 = vst.msk [vmem:[#allocation2 + $0xb0] sm:$0xff] %vm850, %v799
        %874 = vst.msk [vmem:[#allocation2 + $0xb8] sm:$0xff] %vm850, %v801
        %875 = vst.msk [vmem:[#allocation2 + $0xc0] sm:$0xff] %vm850, %v803
        %876 = vst.msk [vmem:[#allocation2 + $0xc8] sm:$0xff] %vm850, %v805
        %877 = vst.msk [vmem:[#allocation2 + $0xd0] sm:$0xff] %vm850, %v807
        %878 = vst.msk [vmem:[#allocation2 + $0xd8] sm:$0xff] %vm850, %v809
        %879 = vst.msk [vmem:[#allocation2 + $0xe0] sm:$0xff] %vm850, %v811
        %880 = vst.msk [vmem:[#allocation2 + $0xe8] sm:$0xff] %vm850, %v813
        %881 = vst.msk [vmem:[#allocation2 + $0xf0] sm:$0xff] %vm850, %v815
        %882 = vst.msk [vmem:[#allocation2 + $0xf8] sm:$0xff] %vm850, %v817
        %v884 = vrot.slane %v245, 1
        %v885 = vrot.slane %v246, 1
        %v886 = vsel %vm332, %v884, %v885
        %v887 = vrot.slane %v247, 1
        %v888 = vsel %vm332, %v885, %v887
        %889 = vrot.lane.b32.xlu0 %v340, 16
        %v890 = vpop.permute.xlu0 %889
        %891 = vrot.lane.b32.xlu0 %v342, 16
        %v892 = vpop.permute.xlu0 %891
        %893 = vrot.lane.b32.xlu0 %v345, 16
        %v894 = vpop.permute.xlu0 %893
        %895 = vrot.lane.b32.xlu0 %v347, 16
        %v896 = vpop.permute.xlu0 %895
        %897 = vrot.lane.b32.xlu0 %v350, 16
        %v898 = vpop.permute.xlu0 %897
        %899 = vrot.lane.b32.xlu0 %v352, 16
        %v900 = vpop.permute.xlu0 %899
        %901 = vrot.lane.b32.xlu0 %v355, 16
        %v902 = vpop.permute.xlu0 %901
        %903 = vrot.lane.b32.xlu0 %v357, 16
        %v904 = vpop.permute.xlu0 %903
        %905 = vrot.lane.b32.xlu0 %v360, 16
        %v906 = vpop.permute.xlu0 %905
        %907 = vrot.lane.b32.xlu0 %v362, 16
        %v908 = vpop.permute.xlu0 %907
        %909 = vrot.lane.b32.xlu0 %v365, 16
        %v910 = vpop.permute.xlu0 %909
        %911 = vrot.lane.b32.xlu0 %v367, 16
        %v912 = vpop.permute.xlu0 %911
        %913 = vrot.lane.b32.xlu0 %v370, 16
        %v914 = vpop.permute.xlu0 %913
        %915 = vrot.lane.b32.xlu0 %v372, 16
        %v916 = vpop.permute.xlu0 %915
        %917 = vrot.lane.b32.xlu0 %v375, 16
        %v918 = vpop.permute.xlu0 %917
        %919 = vrot.lane.b32.xlu0 %v377, 16
        %v920 = vpop.permute.xlu0 %919
        %921 = vrot.lane.b32.xlu0 %v380, 16
        %v922 = vpop.permute.xlu0 %921
        %923 = vrot.lane.b32.xlu0 %v382, 16
        %v924 = vpop.permute.xlu0 %923
        %925 = vrot.lane.b32.xlu0 %v385, 16
        %v926 = vpop.permute.xlu0 %925
        %927 = vrot.lane.b32.xlu0 %v387, 16
        %v928 = vpop.permute.xlu0 %927
        %929 = vrot.lane.b32.xlu0 %v390, 16
        %v930 = vpop.permute.xlu0 %929
        %931 = vrot.lane.b32.xlu0 %v392, 16
        %v932 = vpop.permute.xlu0 %931
        %933 = vrot.lane.b32.xlu0 %v395, 16
        %v934 = vpop.permute.xlu0 %933
        %935 = vrot.lane.b32.xlu0 %v397, 16
        %v936 = vpop.permute.xlu0 %935
        %937 = vrot.lane.b32.xlu0 %v400, 16
        %v938 = vpop.permute.xlu0 %937
        %939 = vrot.lane.b32.xlu0 %v402, 16
        %v940 = vpop.permute.xlu0 %939
        %941 = vrot.lane.b32.xlu0 %v405, 16
        %v942 = vpop.permute.xlu0 %941
        %943 = vrot.lane.b32.xlu0 %v407, 16
        %v944 = vpop.permute.xlu0 %943
        %945 = vrot.lane.b32.xlu0 %v410, 16
        %v946 = vpop.permute.xlu0 %945
        %947 = vrot.lane.b32.xlu0 %v412, 16
        %v948 = vpop.permute.xlu0 %947
        %949 = vrot.lane.b32.xlu0 %v886, 16
        %v950 = vpop.permute.xlu0 %949
        %951 = vrot.lane.b32.xlu0 %v888, 16
        %v952 = vpop.permute.xlu0 %951
        %vm985 = vcmask 162944
        %986 = vst.msk [vmem:[#allocation2] sm:$0xff] %vm985, %v890
        %987 = vst.msk [vmem:[#allocation2 + $0x8] sm:$0xff] %vm985, %v892
        %988 = vst.msk [vmem:[#allocation2 + $0x10] sm:$0xff] %vm985, %v894
        %989 = vst.msk [vmem:[#allocation2 + $0x18] sm:$0xff] %vm985, %v896
        %990 = vst.msk [vmem:[#allocation2 + $0x20] sm:$0xff] %vm985, %v898
        %991 = vst.msk [vmem:[#allocation2 + $0x28] sm:$0xff] %vm985, %v900
        %992 = vst.msk [vmem:[#allocation2 + $0x30] sm:$0xff] %vm985, %v902
        %993 = vst.msk [vmem:[#allocation2 + $0x38] sm:$0xff] %vm985, %v904
        %994 = vst.msk [vmem:[#allocation2 + $0x40] sm:$0xff] %vm985, %v906
        %995 = vst.msk [vmem:[#allocation2 + $0x48] sm:$0xff] %vm985, %v908
        %996 = vst.msk [vmem:[#allocation2 + $0x50] sm:$0xff] %vm985, %v910
        %997 = vst.msk [vmem:[#allocation2 + $0x58] sm:$0xff] %vm985, %v912
        %998 = vst.msk [vmem:[#allocation2 + $0x60] sm:$0xff] %vm985, %v914
        %999 = vst.msk [vmem:[#allocation2 + $0x68] sm:$0xff] %vm985, %v916
        %1000 = vst.msk [vmem:[#allocation2 + $0x70] sm:$0xff] %vm985, %v918
        %1001 = vst.msk [vmem:[#allocation2 + $0x78] sm:$0xff] %vm985, %v920
        %1002 = vst.msk [vmem:[#allocation2 + $0x80] sm:$0xff] %vm985, %v922
        %1003 = vst.msk [vmem:[#allocation2 + $0x88] sm:$0xff] %vm985, %v924
        %1004 = vst.msk [vmem:[#allocation2 + $0x90] sm:$0xff] %vm985, %v926
        %1005 = vst.msk [vmem:[#allocation2 + $0x98] sm:$0xff] %vm985, %v928
        %1006 = vst.msk [vmem:[#allocation2 + $0xa0] sm:$0xff] %vm985, %v930
        %1007 = vst.msk [vmem:[#allocation2 + $0xa8] sm:$0xff] %vm985, %v932
        %1008 = vst.msk [vmem:[#allocation2 + $0xb0] sm:$0xff] %vm985, %v934
        %1009 = vst.msk [vmem:[#allocation2 + $0xb8] sm:$0xff] %vm985, %v936
        %1010 = vst.msk [vmem:[#allocation2 + $0xc0] sm:$0xff] %vm985, %v938
        %1011 = vst.msk [vmem:[#allocation2 + $0xc8] sm:$0xff] %vm985, %v940
        %1012 = vst.msk [vmem:[#allocation2 + $0xd0] sm:$0xff] %vm985, %v942
        %1013 = vst.msk [vmem:[#allocation2 + $0xd8] sm:$0xff] %vm985, %v944
        %1014 = vst.msk [vmem:[#allocation2 + $0xe0] sm:$0xff] %vm985, %v946
        %1015 = vst.msk [vmem:[#allocation2 + $0xe8] sm:$0xff] %vm985, %v948
        %1016 = vst.msk [vmem:[#allocation2 + $0xf0] sm:$0xff] %vm985, %v950
        %1017 = vst.msk [vmem:[#allocation2 + $0xf8] sm:$0xff] %vm985, %v952
        %v1018 = vrot.slane %v245, 2
        %v1019 = vrot.slane %v246, 2
        %v1020 = vsel %vm542, %v1018, %v1019
        %v1021 = vrot.slane %v247, 2
        %v1022 = vsel %vm542, %v1019, %v1021
        %1023 = vrot.lane.b32.xlu0 %v550, 20
        %v1024 = vpop.permute.xlu0 %1023
        %1025 = vrot.lane.b32.xlu0 %v552, 20
        %v1026 = vpop.permute.xlu0 %1025
        %1027 = vrot.lane.b32.xlu0 %v555, 20
        %v1028 = vpop.permute.xlu0 %1027
        %1029 = vrot.lane.b32.xlu0 %v557, 20
        %v1030 = vpop.permute.xlu0 %1029
        %1031 = vrot.lane.b32.xlu0 %v560, 20
        %v1032 = vpop.permute.xlu0 %1031
        %1033 = vrot.lane.b32.xlu0 %v562, 20
        %v1034 = vpop.permute.xlu0 %1033
        %1035 = vrot.lane.b32.xlu0 %v565, 20
        %v1036 = vpop.permute.xlu0 %1035
        %1037 = vrot.lane.b32.xlu0 %v567, 20
        %v1038 = vpop.permute.xlu0 %1037
        %1039 = vrot.lane.b32.xlu0 %v570, 20
        %v1040 = vpop.permute.xlu0 %1039
        %1041 = vrot.lane.b32.xlu0 %v572, 20
        %v1042 = vpop.permute.xlu0 %1041
        %1043 = vrot.lane.b32.xlu0 %v575, 20
        %v1044 = vpop.permute.xlu0 %1043
        %1045 = vrot.lane.b32.xlu0 %v577, 20
        %v1046 = vpop.permute.xlu0 %1045
        %1047 = vrot.lane.b32.xlu0 %v580, 20
        %v1048 = vpop.permute.xlu0 %1047
        %1049 = vrot.lane.b32.xlu0 %v582, 20
        %v1050 = vpop.permute.xlu0 %1049
        %1051 = vrot.lane.b32.xlu0 %v585, 20
        %v1052 = vpop.permute.xlu0 %1051
        %1053 = vrot.lane.b32.xlu0 %v587, 20
        %v1054 = vpop.permute.xlu0 %1053
        %1055 = vrot.lane.b32.xlu0 %v590, 20
        %v1056 = vpop.permute.xlu0 %1055
        %1057 = vrot.lane.b32.xlu0 %v592, 20
        %v1058 = vpop.permute.xlu0 %1057
        %1059 = vrot.lane.b32.xlu0 %v595, 20
        %v1060 = vpop.permute.xlu0 %1059
        %1061 = vrot.lane.b32.xlu0 %v597, 20
        %v1062 = vpop.permute.xlu0 %1061
        %1063 = vrot.lane.b32.xlu0 %v600, 20
        %v1064 = vpop.permute.xlu0 %1063
        %1065 = vrot.lane.b32.xlu0 %v602, 20
        %v1066 = vpop.permute.xlu0 %1065
        %1067 = vrot.lane.b32.xlu0 %v605, 20
        %v1068 = vpop.permute.xlu0 %1067
        %1069 = vrot.lane.b32.xlu0 %v607, 20
        %v1070 = vpop.permute.xlu0 %1069
        %1071 = vrot.lane.b32.xlu0 %v610, 20
        %v1072 = vpop.permute.xlu0 %1071
        %1073 = vrot.lane.b32.xlu0 %v612, 20
        %v1074 = vpop.permute.xlu0 %1073
        %1075 = vrot.lane.b32.xlu0 %v615, 20
        %v1076 = vpop.permute.xlu0 %1075
        %1077 = vrot.lane.b32.xlu0 %v617, 20
        %v1078 = vpop.permute.xlu0 %1077
        %1079 = vrot.lane.b32.xlu0 %v620, 20
        %v1080 = vpop.permute.xlu0 %1079
        %1081 = vrot.lane.b32.xlu0 %v622, 20
        %v1082 = vpop.permute.xlu0 %1081
        %1083 = vrot.lane.b32.xlu0 %v1020, 20
        %v1084 = vpop.permute.xlu0 %1083
        %1085 = vrot.lane.b32.xlu0 %v1022, 20
        %v1086 = vpop.permute.xlu0 %1085
        %vm1119 = vcmask 195744
        %1120 = vst.msk [vmem:[#allocation2] sm:$0xff] %vm1119, %v1024
        %1121 = vst.msk [vmem:[#allocation2 + $0x8] sm:$0xff] %vm1119, %v1026
        %1122 = vst.msk [vmem:[#allocation2 + $0x10] sm:$0xff] %vm1119, %v1028
        %1123 = vst.msk [vmem:[#allocation2 + $0x18] sm:$0xff] %vm1119, %v1030
        %1124 = vst.msk [vmem:[#allocation2 + $0x20] sm:$0xff] %vm1119, %v1032
        %1125 = vst.msk [vmem:[#allocation2 + $0x28] sm:$0xff] %vm1119, %v1034
        %1126 = vst.msk [vmem:[#allocation2 + $0x30] sm:$0xff] %vm1119, %v1036
        %1127 = vst.msk [vmem:[#allocation2 + $0x38] sm:$0xff] %vm1119, %v1038
        %1128 = vst.msk [vmem:[#allocation2 + $0x40] sm:$0xff] %vm1119, %v1040
        %1129 = vst.msk [vmem:[#allocation2 + $0x48] sm:$0xff] %vm1119, %v1042
        %1130 = vst.msk [vmem:[#allocation2 + $0x50] sm:$0xff] %vm1119, %v1044
        %1131 = vst.msk [vmem:[#allocation2 + $0x58] sm:$0xff] %vm1119, %v1046
        %1132 = vst.msk [vmem:[#allocation2 + $0x60] sm:$0xff] %vm1119, %v1048
        %1133 = vst.msk [vmem:[#allocation2 + $0x68] sm:$0xff] %vm1119, %v1050
        %1134 = vst.msk [vmem:[#allocation2 + $0x70] sm:$0xff] %vm1119, %v1052
        %1135 = vst.msk [vmem:[#allocation2 + $0x78] sm:$0xff] %vm1119, %v1054
        %1136 = vst.msk [vmem:[#allocation2 + $0x80] sm:$0xff] %vm1119, %v1056
        %1137 = vst.msk [vmem:[#allocation2 + $0x88] sm:$0xff] %vm1119, %v1058
        %1138 = vst.msk [vmem:[#allocation2 + $0x90] sm:$0xff] %vm1119, %v1060
        %1139 = vst.msk [vmem:[#allocation2 + $0x98] sm:$0xff] %vm1119, %v1062
        %1140 = vst.msk [vmem:[#allocation2 + $0xa0] sm:$0xff] %vm1119, %v1064
        %1141 = vst.msk [vmem:[#allocation2 + $0xa8] sm:$0xff] %vm1119, %v1066
        %1142 = vst.msk [vmem:[#allocation2 + $0xb0] sm:$0xff] %vm1119, %v1068
        %1143 = vst.msk [vmem:[#allocation2 + $0xb8] sm:$0xff] %vm1119, %v1070
        %1144 = vst.msk [vmem:[#allocation2 + $0xc0] sm:$0xff] %vm1119, %v1072
        %1145 = vst.msk [vmem:[#allocation2 + $0xc8] sm:$0xff] %vm1119, %v1074
        %1146 = vst.msk [vmem:[#allocation2 + $0xd0] sm:$0xff] %vm1119, %v1076
        %1147 = vst.msk [vmem:[#allocation2 + $0xd8] sm:$0xff] %vm1119, %v1078
        %1148 = vst.msk [vmem:[#allocation2 + $0xe0] sm:$0xff] %vm1119, %v1080
        %1149 = vst.msk [vmem:[#allocation2 + $0xe8] sm:$0xff] %vm1119, %v1082
        %1150 = vst.msk [vmem:[#allocation2 + $0xf0] sm:$0xff] %vm1119, %v1084
        %1151 = vst.msk [vmem:[#allocation2 + $0xf8] sm:$0xff] %vm1119, %v1086
        %1154 = vrot.lane.b32.xlu0 %v203, 24
        %v1155 = vpop.permute.xlu0 %1154
        %1156 = vrot.lane.b32.xlu0 %v204, 24
        %v1157 = vpop.permute.xlu0 %1156
        %1158 = vrot.lane.b32.xlu0 %v206, 24
        %v1159 = vpop.permute.xlu0 %1158
        %1160 = vrot.lane.b32.xlu0 %v207, 24
        %v1161 = vpop.permute.xlu0 %1160
        %1162 = vrot.lane.b32.xlu0 %v209, 24
        %v1163 = vpop.permute.xlu0 %1162
        %1164 = vrot.lane.b32.xlu0 %v210, 24
        %v1165 = vpop.permute.xlu0 %1164
        %1166 = vrot.lane.b32.xlu0 %v212, 24
        %v1167 = vpop.permute.xlu0 %1166
        %1168 = vrot.lane.b32.xlu0 %v213, 24
        %v1169 = vpop.permute.xlu0 %1168
        %1170 = vrot.lane.b32.xlu0 %v215, 24
        %v1171 = vpop.permute.xlu0 %1170
        %1172 = vrot.lane.b32.xlu0 %v216, 24
        %v1173 = vpop.permute.xlu0 %1172
        %1174 = vrot.lane.b32.xlu0 %v218, 24
        %v1175 = vpop.permute.xlu0 %1174
        %1176 = vrot.lane.b32.xlu0 %v219, 24
        %v1177 = vpop.permute.xlu0 %1176
        %1178 = vrot.lane.b32.xlu0 %v221, 24
        %v1179 = vpop.permute.xlu0 %1178
        %1180 = vrot.lane.b32.xlu0 %v222, 24
        %v1181 = vpop.permute.xlu0 %1180
        %1182 = vrot.lane.b32.xlu0 %v224, 24
        %v1183 = vpop.permute.xlu0 %1182
        %1184 = vrot.lane.b32.xlu0 %v225, 24
        %v1185 = vpop.permute.xlu0 %1184
        %1186 = vrot.lane.b32.xlu0 %v227, 24
        %v1187 = vpop.permute.xlu0 %1186
        %1188 = vrot.lane.b32.xlu0 %v228, 24
        %v1189 = vpop.permute.xlu0 %1188
        %1190 = vrot.lane.b32.xlu0 %v230, 24
        %v1191 = vpop.permute.xlu0 %1190
        %1192 = vrot.lane.b32.xlu0 %v231, 24
        %v1193 = vpop.permute.xlu0 %1192
        %1194 = vrot.lane.b32.xlu0 %v233, 24
        %v1195 = vpop.permute.xlu0 %1194
        %1196 = vrot.lane.b32.xlu0 %v234, 24
        %v1197 = vpop.permute.xlu0 %1196
        %1198 = vrot.lane.b32.xlu0 %v236, 24
        %v1199 = vpop.permute.xlu0 %1198
        %1200 = vrot.lane.b32.xlu0 %v237, 24
        %v1201 = vpop.permute.xlu0 %1200
        %1202 = vrot.lane.b32.xlu0 %v239, 24
        %v1203 = vpop.permute.xlu0 %1202
        %1204 = vrot.lane.b32.xlu0 %v240, 24
        %v1205 = vpop.permute.xlu0 %1204
        %1206 = vrot.lane.b32.xlu0 %v242, 24
        %v1207 = vpop.permute.xlu0 %1206
        %1208 = vrot.lane.b32.xlu0 %v243, 24
        %v1209 = vpop.permute.xlu0 %1208
        %1210 = vrot.lane.b32.xlu0 %v245, 24
        %v1211 = vpop.permute.xlu0 %1210
        %1212 = vrot.lane.b32.xlu0 %v246, 24
        %v1213 = vpop.permute.xlu0 %1212
        %1214 = vrot.lane.b32.xlu0 %v248, 24
        %v1215 = vpop.permute.xlu0 %1214
        %1216 = vrot.lane.b32.xlu0 %v249, 24
        %v1217 = vpop.permute.xlu0 %1216
        %vm1250 = vcmask 228544
        %1251 = vst.msk [vmem:[#allocation2] sm:$0xff] %vm1250, %v1155
        %1252 = vst.msk [vmem:[#allocation2 + $0x8] sm:$0xff] %vm1250, %v1157
        %1253 = vst.msk [vmem:[#allocation2 + $0x10] sm:$0xff] %vm1250, %v1159
        %1254 = vst.msk [vmem:[#allocation2 + $0x18] sm:$0xff] %vm1250, %v1161
        %1255 = vst.msk [vmem:[#allocation2 + $0x20] sm:$0xff] %vm1250, %v1163
        %1256 = vst.msk [vmem:[#allocation2 + $0x28] sm:$0xff] %vm1250, %v1165
        %1257 = vst.msk [vmem:[#allocation2 + $0x30] sm:$0xff] %vm1250, %v1167
        %1258 = vst.msk [vmem:[#allocation2 + $0x38] sm:$0xff] %vm1250, %v1169
        %1259 = vst.msk [vmem:[#allocation2 + $0x40] sm:$0xff] %vm1250, %v1171
        %1260 = vst.msk [vmem:[#allocation2 + $0x48] sm:$0xff] %vm1250, %v1173
        %1261 = vst.msk [vmem:[#allocation2 + $0x50] sm:$0xff] %vm1250, %v1175
        %1262 = vst.msk [vmem:[#allocation2 + $0x58] sm:$0xff] %vm1250, %v1177
        %1263 = vst.msk [vmem:[#allocation2 + $0x60] sm:$0xff] %vm1250, %v1179
        %1264 = vst.msk [vmem:[#allocation2 + $0x68] sm:$0xff] %vm1250, %v1181
        %1265 = vst.msk [vmem:[#allocation2 + $0x70] sm:$0xff] %vm1250, %v1183
        %1266 = vst.msk [vmem:[#allocation2 + $0x78] sm:$0xff] %vm1250, %v1185
        %1267 = vst.msk [vmem:[#allocation2 + $0x80] sm:$0xff] %vm1250, %v1187
        %1268 = vst.msk [vmem:[#allocation2 + $0x88] sm:$0xff] %vm1250, %v1189
        %1269 = vst.msk [vmem:[#allocation2 + $0x90] sm:$0xff] %vm1250, %v1191
        %1270 = vst.msk [vmem:[#allocation2 + $0x98] sm:$0xff] %vm1250, %v1193
        %1271 = vst.msk [vmem:[#allocation2 + $0xa0] sm:$0xff] %vm1250, %v1195
        %1272 = vst.msk [vmem:[#allocation2 + $0xa8] sm:$0xff] %vm1250, %v1197
        %1273 = vst.msk [vmem:[#allocation2 + $0xb0] sm:$0xff] %vm1250, %v1199
        %1274 = vst.msk [vmem:[#allocation2 + $0xb8] sm:$0xff] %vm1250, %v1201
        %1275 = vst.msk [vmem:[#allocation2 + $0xc0] sm:$0xff] %vm1250, %v1203
        %1276 = vst.msk [vmem:[#allocation2 + $0xc8] sm:$0xff] %vm1250, %v1205
        %1277 = vst.msk [vmem:[#allocation2 + $0xd0] sm:$0xff] %vm1250, %v1207
        %1278 = vst.msk [vmem:[#allocation2 + $0xd8] sm:$0xff] %vm1250, %v1209
        %1279 = vst.msk [vmem:[#allocation2 + $0xe0] sm:$0xff] %vm1250, %v1211
        %1280 = vst.msk [vmem:[#allocation2 + $0xe8] sm:$0xff] %vm1250, %v1213
        %1281 = vst.msk [vmem:[#allocation2 + $0xf0] sm:$0xff] %vm1250, %v1215
        %1282 = vst.msk [vmem:[#allocation2 + $0xf8] sm:$0xff] %vm1250, %v1217
        %v1284 = vrot.slane %v248, 1
        %v1285 = vrot.slane %v249, 1
        %v1286 = vsel %vm332, %v1284, %v1285
        %v1287 = vrot.slane %v250, 1
        %v1288 = vsel %vm332, %v1285, %v1287
        %1289 = vrot.lane.b32.xlu0 %v345, 28
        %v1290 = vpop.permute.xlu0 %1289
        %1291 = vrot.lane.b32.xlu0 %v347, 28
        %v1292 = vpop.permute.xlu0 %1291
        %1293 = vrot.lane.b32.xlu0 %v350, 28
        %v1294 = vpop.permute.xlu0 %1293
        %1295 = vrot.lane.b32.xlu0 %v352, 28
        %v1296 = vpop.permute.xlu0 %1295
        %1297 = vrot.lane.b32.xlu0 %v355, 28
        %v1298 = vpop.permute.xlu0 %1297
        %1299 = vrot.lane.b32.xlu0 %v357, 28
        %v1300 = vpop.permute.xlu0 %1299
        %1301 = vrot.lane.b32.xlu0 %v360, 28
        %v1302 = vpop.permute.xlu0 %1301
        %1303 = vrot.lane.b32.xlu0 %v362, 28
        %v1304 = vpop.permute.xlu0 %1303
        %1305 = vrot.lane.b32.xlu0 %v365, 28
        %v1306 = vpop.permute.xlu0 %1305
        %1307 = vrot.lane.b32.xlu0 %v367, 28
        %v1308 = vpop.permute.xlu0 %1307
        %1309 = vrot.lane.b32.xlu0 %v370, 28
        %v1310 = vpop.permute.xlu0 %1309
        %1311 = vrot.lane.b32.xlu0 %v372, 28
        %v1312 = vpop.permute.xlu0 %1311
        %1313 = vrot.lane.b32.xlu0 %v375, 28
        %v1314 = vpop.permute.xlu0 %1313
        %1315 = vrot.lane.b32.xlu0 %v377, 28
        %v1316 = vpop.permute.xlu0 %1315
        %1317 = vrot.lane.b32.xlu0 %v380, 28
        %v1318 = vpop.permute.xlu0 %1317
        %1319 = vrot.lane.b32.xlu0 %v382, 28
        %v1320 = vpop.permute.xlu0 %1319
        %1321 = vrot.lane.b32.xlu0 %v385, 28
        %v1322 = vpop.permute.xlu0 %1321
        %1323 = vrot.lane.b32.xlu0 %v387, 28
        %v1324 = vpop.permute.xlu0 %1323
        %1325 = vrot.lane.b32.xlu0 %v390, 28
        %v1326 = vpop.permute.xlu0 %1325
        %1327 = vrot.lane.b32.xlu0 %v392, 28
        %v1328 = vpop.permute.xlu0 %1327
        %1329 = vrot.lane.b32.xlu0 %v395, 28
        %v1330 = vpop.permute.xlu0 %1329
        %1331 = vrot.lane.b32.xlu0 %v397, 28
        %v1332 = vpop.permute.xlu0 %1331
        %1333 = vrot.lane.b32.xlu0 %v400, 28
        %v1334 = vpop.permute.xlu0 %1333
        %1335 = vrot.lane.b32.xlu0 %v402, 28
        %v1336 = vpop.permute.xlu0 %1335
        %1337 = vrot.lane.b32.xlu0 %v405, 28
        %v1338 = vpop.permute.xlu0 %1337
        %1339 = vrot.lane.b32.xlu0 %v407, 28
        %v1340 = vpop.permute.xlu0 %1339
        %1341 = vrot.lane.b32.xlu0 %v410, 28
        %v1342 = vpop.permute.xlu0 %1341
        %1343 = vrot.lane.b32.xlu0 %v412, 28
        %v1344 = vpop.permute.xlu0 %1343
        %1345 = vrot.lane.b32.xlu0 %v886, 28
        %v1346 = vpop.permute.xlu0 %1345
        %1347 = vrot.lane.b32.xlu0 %v888, 28
        %v1348 = vpop.permute.xlu0 %1347
        %1349 = vrot.lane.b32.xlu0 %v1286, 28
        %v1350 = vpop.permute.xlu0 %1349
        %1351 = vrot.lane.b32.xlu0 %v1288, 28
        %v1352 = vpop.permute.xlu0 %1351
        %vm1385 = vcmask 261344
        %1386 = vst.msk [vmem:[#allocation2] sm:$0xff] %vm1385, %v1290
        %1387 = vst.msk [vmem:[#allocation2 + $0x8] sm:$0xff] %vm1385, %v1292
        %1388 = vst.msk [vmem:[#allocation2 + $0x10] sm:$0xff] %vm1385, %v1294
        %1389 = vst.msk [vmem:[#allocation2 + $0x18] sm:$0xff] %vm1385, %v1296
        %1390 = vst.msk [vmem:[#allocation2 + $0x20] sm:$0xff] %vm1385, %v1298
        %1391 = vst.msk [vmem:[#allocation2 + $0x28] sm:$0xff] %vm1385, %v1300
        %1392 = vst.msk [vmem:[#allocation2 + $0x30] sm:$0xff] %vm1385, %v1302
        %1393 = vst.msk [vmem:[#allocation2 + $0x38] sm:$0xff] %vm1385, %v1304
        %1394 = vst.msk [vmem:[#allocation2 + $0x40] sm:$0xff] %vm1385, %v1306
        %1395 = vst.msk [vmem:[#allocation2 + $0x48] sm:$0xff] %vm1385, %v1308
        %1396 = vst.msk [vmem:[#allocation2 + $0x50] sm:$0xff] %vm1385, %v1310
        %1397 = vst.msk [vmem:[#allocation2 + $0x58] sm:$0xff] %vm1385, %v1312
        %1398 = vst.msk [vmem:[#allocation2 + $0x60] sm:$0xff] %vm1385, %v1314
        %1399 = vst.msk [vmem:[#allocation2 + $0x68] sm:$0xff] %vm1385, %v1316
        %1400 = vst.msk [vmem:[#allocation2 + $0x70] sm:$0xff] %vm1385, %v1318
        %1401 = vst.msk [vmem:[#allocation2 + $0x78] sm:$0xff] %vm1385, %v1320
        %1402 = vst.msk [vmem:[#allocation2 + $0x80] sm:$0xff] %vm1385, %v1322
        %1403 = vst.msk [vmem:[#allocation2 + $0x88] sm:$0xff] %vm1385, %v1324
        %1404 = vst.msk [vmem:[#allocation2 + $0x90] sm:$0xff] %vm1385, %v1326
        %1405 = vst.msk [vmem:[#allocation2 + $0x98] sm:$0xff] %vm1385, %v1328
        %1406 = vst.msk [vmem:[#allocation2 + $0xa0] sm:$0xff] %vm1385, %v1330
        %1407 = vst.msk [vmem:[#allocation2 + $0xa8] sm:$0xff] %vm1385, %v1332
        %1408 = vst.msk [vmem:[#allocation2 + $0xb0] sm:$0xff] %vm1385, %v1334
        %1409 = vst.msk [vmem:[#allocation2 + $0xb8] sm:$0xff] %vm1385, %v1336
        %1410 = vst.msk [vmem:[#allocation2 + $0xc0] sm:$0xff] %vm1385, %v1338
        %1411 = vst.msk [vmem:[#allocation2 + $0xc8] sm:$0xff] %vm1385, %v1340
        %1412 = vst.msk [vmem:[#allocation2 + $0xd0] sm:$0xff] %vm1385, %v1342
        %1413 = vst.msk [vmem:[#allocation2 + $0xd8] sm:$0xff] %vm1385, %v1344
        %1414 = vst.msk [vmem:[#allocation2 + $0xe0] sm:$0xff] %vm1385, %v1346
        %1415 = vst.msk [vmem:[#allocation2 + $0xe8] sm:$0xff] %vm1385, %v1348
        %1416 = vst.msk [vmem:[#allocation2 + $0xf0] sm:$0xff] %vm1385, %v1350
        %1417 = vst.msk [vmem:[#allocation2 + $0xf8] sm:$0xff] %vm1385, %v1352
        %v1418 = vrot.slane %v248, 2
        %v1419 = vrot.slane %v249, 2
        %v1420 = vsel %vm542, %v1418, %v1419
        %v1421 = vrot.slane %v250, 2
        %v1422 = vsel %vm542, %v1419, %v1421
        %1423 = vrot.lane.b32.xlu0 %v555, 32
        %v1424 = vpop.permute.xlu0 %1423
        %1425 = vrot.lane.b32.xlu0 %v557, 32
        %v1426 = vpop.permute.xlu0 %1425
        %1427 = vrot.lane.b32.xlu0 %v560, 32
        %v1428 = vpop.permute.xlu0 %1427
        %1429 = vrot.lane.b32.xlu0 %v562, 32
        %v1430 = vpop.permute.xlu0 %1429
        %1431 = vrot.lane.b32.xlu0 %v565, 32
        %v1432 = vpop.permute.xlu0 %1431
        %1433 = vrot.lane.b32.xlu0 %v567, 32
        %v1434 = vpop.permute.xlu0 %1433
        %1435 = vrot.lane.b32.xlu0 %v570, 32
        %v1436 = vpop.permute.xlu0 %1435
        %1437 = vrot.lane.b32.xlu0 %v572, 32
        %v1438 = vpop.permute.xlu0 %1437
        %1439 = vrot.lane.b32.xlu0 %v575, 32
        %v1440 = vpop.permute.xlu0 %1439
        %1441 = vrot.lane.b32.xlu0 %v577, 32
        %v1442 = vpop.permute.xlu0 %1441
        %1443 = vrot.lane.b32.xlu0 %v580, 32
        %v1444 = vpop.permute.xlu0 %1443
        %1445 = vrot.lane.b32.xlu0 %v582, 32
        %v1446 = vpop.permute.xlu0 %1445
        %1447 = vrot.lane.b32.xlu0 %v585, 32
        %v1448 = vpop.permute.xlu0 %1447
        %1449 = vrot.lane.b32.xlu0 %v587, 32
        %v1450 = vpop.permute.xlu0 %1449
        %1451 = vrot.lane.b32.xlu0 %v590, 32
        %v1452 = vpop.permute.xlu0 %1451
        %1453 = vrot.lane.b32.xlu0 %v592, 32
        %v1454 = vpop.permute.xlu0 %1453
        %1455 = vrot.lane.b32.xlu0 %v595, 32
        %v1456 = vpop.permute.xlu0 %1455
        %1457 = vrot.lane.b32.xlu0 %v597, 32
        %v1458 = vpop.permute.xlu0 %1457
        %1459 = vrot.lane.b32.xlu0 %v600, 32
        %v1460 = vpop.permute.xlu0 %1459
        %1461 = vrot.lane.b32.xlu0 %v602, 32
        %v1462 = vpop.permute.xlu0 %1461
        %1463 = vrot.lane.b32.xlu0 %v605, 32
        %v1464 = vpop.permute.xlu0 %1463
        %1465 = vrot.lane.b32.xlu0 %v607, 32
        %v1466 = vpop.permute.xlu0 %1465
        %1467 = vrot.lane.b32.xlu0 %v610, 32
        %v1468 = vpop.permute.xlu0 %1467
        %1469 = vrot.lane.b32.xlu0 %v612, 32
        %v1470 = vpop.permute.xlu0 %1469
        %1471 = vrot.lane.b32.xlu0 %v615, 32
        %v1472 = vpop.permute.xlu0 %1471
        %1473 = vrot.lane.b32.xlu0 %v617, 32
        %v1474 = vpop.permute.xlu0 %1473
        %1475 = vrot.lane.b32.xlu0 %v620, 32
        %v1476 = vpop.permute.xlu0 %1475
        %1477 = vrot.lane.b32.xlu0 %v622, 32
        %v1478 = vpop.permute.xlu0 %1477
        %1479 = vrot.lane.b32.xlu0 %v1020, 32
        %v1480 = vpop.permute.xlu0 %1479
        %1481 = vrot.lane.b32.xlu0 %v1022, 32
        %v1482 = vpop.permute.xlu0 %1481
        %1483 = vrot.lane.b32.xlu0 %v1420, 32
        %v1484 = vpop.permute.xlu0 %1483
        %1485 = vrot.lane.b32.xlu0 %v1422, 32
        %v1486 = vpop.permute.xlu0 %1485
        %vm1519 = vcmask 294144
        %1520 = vst.msk [vmem:[#allocation2] sm:$0xff] %vm1519, %v1424
        %1521 = vst.msk [vmem:[#allocation2 + $0x8] sm:$0xff] %vm1519, %v1426
        %1522 = vst.msk [vmem:[#allocation2 + $0x10] sm:$0xff] %vm1519, %v1428
        %1523 = vst.msk [vmem:[#allocation2 + $0x18] sm:$0xff] %vm1519, %v1430
        %1524 = vst.msk [vmem:[#allocation2 + $0x20] sm:$0xff] %vm1519, %v1432
        %1525 = vst.msk [vmem:[#allocation2 + $0x28] sm:$0xff] %vm1519, %v1434
        %1526 = vst.msk [vmem:[#allocation2 + $0x30] sm:$0xff] %vm1519, %v1436
        %1527 = vst.msk [vmem:[#allocation2 + $0x38] sm:$0xff] %vm1519, %v1438
        %1528 = vst.msk [vmem:[#allocation2 + $0x40] sm:$0xff] %vm1519, %v1440
        %1529 = vst.msk [vmem:[#allocation2 + $0x48] sm:$0xff] %vm1519, %v1442
        %1530 = vst.msk [vmem:[#allocation2 + $0x50] sm:$0xff] %vm1519, %v1444
        %1531 = vst.msk [vmem:[#allocation2 + $0x58] sm:$0xff] %vm1519, %v1446
        %1532 = vst.msk [vmem:[#allocation2 + $0x60] sm:$0xff] %vm1519, %v1448
        %1533 = vst.msk [vmem:[#allocation2 + $0x68] sm:$0xff] %vm1519, %v1450
        %1534 = vst.msk [vmem:[#allocation2 + $0x70] sm:$0xff] %vm1519, %v1452
        %1535 = vst.msk [vmem:[#allocation2 + $0x78] sm:$0xff] %vm1519, %v1454
        %1536 = vst.msk [vmem:[#allocation2 + $0x80] sm:$0xff] %vm1519, %v1456
        %1537 = vst.msk [vmem:[#allocation2 + $0x88] sm:$0xff] %vm1519, %v1458
        %1538 = vst.msk [vmem:[#allocation2 + $0x90] sm:$0xff] %vm1519, %v1460
        %1539 = vst.msk [vmem:[#allocation2 + $0x98] sm:$0xff] %vm1519, %v1462
        %1540 = vst.msk [vmem:[#allocation2 + $0xa0] sm:$0xff] %vm1519, %v1464
        %1541 = vst.msk [vmem:[#allocation2 + $0xa8] sm:$0xff] %vm1519, %v1466
        %1542 = vst.msk [vmem:[#allocation2 + $0xb0] sm:$0xff] %vm1519, %v1468
        %1543 = vst.msk [vmem:[#allocation2 + $0xb8] sm:$0xff] %vm1519, %v1470
        %1544 = vst.msk [vmem:[#allocation2 + $0xc0] sm:$0xff] %vm1519, %v1472
        %1545 = vst.msk [vmem:[#allocation2 + $0xc8] sm:$0xff] %vm1519, %v1474
        %1546 = vst.msk [vmem:[#allocation2 + $0xd0] sm:$0xff] %vm1519, %v1476
        %1547 = vst.msk [vmem:[#allocation2 + $0xd8] sm:$0xff] %vm1519, %v1478
        %1548 = vst.msk [vmem:[#allocation2 + $0xe0] sm:$0xff] %vm1519, %v1480
        %1549 = vst.msk [vmem:[#allocation2 + $0xe8] sm:$0xff] %vm1519, %v1482
        %1550 = vst.msk [vmem:[#allocation2 + $0xf0] sm:$0xff] %vm1519, %v1484
        %1551 = vst.msk [vmem:[#allocation2 + $0xf8] sm:$0xff] %vm1519, %v1486
        %v1552 = vld [vmem:[#allocation2] sm:$0xff]
        %v1553 = vld [vmem:[#allocation2 + $0x8] sm:$0xff]
        %v1554 = vld [vmem:[#allocation2 + $0x10] sm:$0xff]
        %v1555 = vld [vmem:[#allocation2 + $0x18] sm:$0xff]
        %v1556 = vld [vmem:[#allocation2 + $0x20] sm:$0xff]
        %v1557 = vld [vmem:[#allocation2 + $0x28] sm:$0xff]
        %v1558 = vld [vmem:[#allocation2 + $0x30] sm:$0xff]
        %v1559 = vld [vmem:[#allocation2 + $0x38] sm:$0xff]
        %v1560 = vld [vmem:[#allocation2 + $0x40] sm:$0xff]
        %v1561 = vld [vmem:[#allocation2 + $0x48] sm:$0xff]
        %v1562 = vld [vmem:[#allocation2 + $0x50] sm:$0xff]
        %v1563 = vld [vmem:[#allocation2 + $0x58] sm:$0xff]
        %v1564 = vld [vmem:[#allocation2 + $0x60] sm:$0xff]
        %v1565 = vld [vmem:[#allocation2 + $0x68] sm:$0xff]
        %v1566 = vld [vmem:[#allocation2 + $0x70] sm:$0xff]
        %v1567 = vld [vmem:[#allocation2 + $0x78] sm:$0xff]
        %v1568 = vld [vmem:[#allocation2 + $0x80] sm:$0xff]
        %v1569 = vld [vmem:[#allocation2 + $0x88] sm:$0xff]
        %v1570 = vld [vmem:[#allocation2 + $0x90] sm:$0xff]
        %v1571 = vld [vmem:[#allocation2 + $0x98] sm:$0xff]
        %v1572 = vld [vmem:[#allocation2 + $0xa0] sm:$0xff]
        %v1573 = vld [vmem:[#allocation2 + $0xa8] sm:$0xff]
        %v1574 = vld [vmem:[#allocation2 + $0xb0] sm:$0xff]
        %v1575 = vld [vmem:[#allocation2 + $0xb8] sm:$0xff]
        %v1576 = vld [vmem:[#allocation2 + $0xc0] sm:$0xff]
        %v1577 = vld [vmem:[#allocation2 + $0xc8] sm:$0xff]
        %v1578 = vld [vmem:[#allocation2 + $0xd0] sm:$0xff]
        %v1579 = vld [vmem:[#allocation2 + $0xd8] sm:$0xff]
        %v1580 = vld [vmem:[#allocation2 + $0xe0] sm:$0xff]
        %v1581 = vld [vmem:[#allocation2 + $0xe8] sm:$0xff]
        %v1582 = vld [vmem:[#allocation2 + $0xf0] sm:$0xff]
        %v1583 = vld [vmem:[#allocation2 + $0xf8] sm:$0xff]
        %v1584 = vpack.c.bf16 %v1553, %v1552
        %v1585 = vpack.c.bf16 %v1555, %v1554
        %v1586 = vpack.c.bf16 %v1557, %v1556
        %v1587 = vpack.c.bf16 %v1559, %v1558
        %v1588 = vpack.c.bf16 %v1561, %v1560
        %v1589 = vpack.c.bf16 %v1563, %v1562
        %v1590 = vpack.c.bf16 %v1565, %v1564
        %v1591 = vpack.c.bf16 %v1567, %v1566
        %v1592 = vpack.c.bf16 %v1569, %v1568
        %v1593 = vpack.c.bf16 %v1571, %v1570
        %v1594 = vpack.c.bf16 %v1573, %v1572
        %v1595 = vpack.c.bf16 %v1575, %v1574
        %v1596 = vpack.c.bf16 %v1577, %v1576
        %v1597 = vpack.c.bf16 %v1579, %v1578
        %v1598 = vpack.c.bf16 %v1581, %v1580
        %v1599 = vpack.c.bf16 %v1583, %v1582
        %v1600 = vld [vmem:[%s1] sm:$0xf]
        %v1601 = vld [vmem:[%s1 + $0x4] sm:$0xf]
        %v1602 = vld [vmem:[%s1 + $0x8] sm:$0xf]
        %v1603 = vld [vmem:[%s1 + $0xc] sm:$0xf]
        %v1604 = vld [vmem:[%s1 + $0x10] sm:$0x3]
        %v1610 = vunpack.c.l.b16 %v1600
        %v1611 = vunpack.c.l.b16 %v1601
        %v1612 = vunpack.c.l.b16 %v1602
        %v1613 = vunpack.c.l.b16 %v1603
        %v1614 = vunpack.c.l.b16 %v1604
        %v1615 = vpack.c.b16 %v1611, %v1610
        %v1616 = vpack.c.b16 %v1613, %v1612
        %v1617 = vpack.c.b16 %v1614, %v1614
        %vm1620 = vcmask 293888
        %v1622 = vsel %vm1620, %v1584, 0
        %v1625 = vsel %vm1620, %v1585, 0
        %v1628 = vsel %vm1620, %v1586, 0
        %v1631 = vsel %vm1620, %v1587, 0
        %v1634 = vsel %vm1620, %v1588, 0
        %v1637 = vsel %vm1620, %v1589, 0
        %v1640 = vsel %vm1620, %v1590, 0
        %v1643 = vsel %vm1620, %v1591, 0
        %v1646 = vsel %vm1620, %v1592, 0
        %v1649 = vsel %vm1620, %v1593, 0
        %v1652 = vsel %vm1620, %v1594, 0
        %v1655 = vsel %vm1620, %v1595, 0
        %v1658 = vsel %vm1620, %v1596, 0
        %v1661 = vsel %vm1620, %v1597, 0
        %v1664 = vsel %vm1620, %v1598, 0
        %v1667 = vsel %vm1620, %v1599, 0
        %vm1669 = vcmask 1041408
        %v1671 = vsel %vm1669, %v1617, 0
        %1673 = vmatprep.subr.bf16.mxu0 0
        %1674 = vmatpush1.bf16.msra.mxu0 %v1615
        %1675 = vmatprep.subr.bf16.mxu0 0
        %1676 = vmatpush1.bf16.msra.mxu0 %v1616
        %1677 = vmatprep.subr.bf16.mxu0 0
        %1678 = vmatpush1.bf16.msra.mxu0 %v1671
        %1679 = vmatprep.subr.bf16.mxu0 0
        %1680 = vmatpush1.bf16.msra.mxu0 0
        %1681 = vmatprep.subr.bf16.mxu0 0
        %1682 = vmatpush1.bf16.msra.mxu0 0
        %1683 = vmatprep.subr.bf16.mxu0 0
        %1684 = vmatpush1.bf16.msra.mxu0 0
        %1685 = vmatprep.subr.bf16.mxu0 0
        %1686 = vmatpush1.bf16.msra.mxu0 0
        %1687 = vmatprep.subr.bf16.mxu0 0
        %1688 = vmatpush1.bf16.msra.mxu0 0
        %1689 = vmatprep.subr.bf16.mxu0 0
        %1690 = vmatpush1.bf16.msra.mxu0 0
        %1691 = vmatprep.subr.bf16.mxu0 0
        %1692 = vmatpush1.bf16.msra.mxu0 0
        %1693 = vmatprep.subr.bf16.mxu0 0
        %1694 = vmatpush1.bf16.msra.mxu0 0
        %1695 = vmatprep.subr.bf16.mxu0 0
        %1696 = vmatpush1.bf16.msra.mxu0 0
        %1697 = vmatprep.subr.bf16.mxu0 0
        %1698 = vmatpush1.bf16.msra.mxu0 0
        %1699 = vmatprep.subr.bf16.mxu0 0
        %1700 = vmatpush1.bf16.msra.mxu0 0
        %1701 = vmatprep.subr.bf16.mxu0 0
        %1702 = vmatpush1.bf16.msra.mxu0 0
        %1703 = vmatprep.subr.bf16.mxu0 0
        %1704 = vmatpush1.bf16.msra.mxu0 0
        %1705 = vmatprep.mubr.bf16.mxu0 0
        %1706 = vmatmul.mubr.bf16.gmra.mrb[0].mxu0 %v1622
        %v1707 = vpop.f32.mrb[0].mxu0
        %v1708 = vadd.f32 0.0, %v1707
        %v1709 = vpop.f32.mrb[0].mxu0
        %v1710 = vpop.f32.mrb[0].mxu0
        %v1711 = vadd.f32 0.0, %v1710
        %v1712 = vpop.f32.mrb[0].mxu0
        %1713 = vmatprep.mubr.bf16.mxu0 0
        %1714 = vmatmul.mubr.bf16.gmra.mrb[0].mxu0 %v1625
        %v1715 = vpop.f32.mrb[0].mxu0
        %v1716 = vadd.f32 0.0, %v1715
        %v1717 = vpop.f32.mrb[0].mxu0
        %v1718 = vpop.f32.mrb[0].mxu0
        %v1719 = vadd.f32 0.0, %v1718
        %v1720 = vpop.f32.mrb[0].mxu0
        %1721 = vmatprep.mubr.bf16.mxu0 0
        %1722 = vmatmul.mubr.bf16.gmra.mrb[0].mxu0 %v1628
        %v1723 = vpop.f32.mrb[0].mxu0
        %v1724 = vadd.f32 0.0, %v1723
        %v1725 = vpop.f32.mrb[0].mxu0
        %v1726 = vpop.f32.mrb[0].mxu0
        %v1727 = vadd.f32 0.0, %v1726
        %v1728 = vpop.f32.mrb[0].mxu0
        %1729 = vmatprep.mubr.bf16.mxu0 0
        %1730 = vmatmul.mubr.bf16.gmra.mrb[0].mxu0 %v1631
        %v1731 = vpop.f32.mrb[0].mxu0
        %v1732 = vadd.f32 0.0, %v1731
        %v1733 = vpop.f32.mrb[0].mxu0
        %v1734 = vpop.f32.mrb[0].mxu0
        %v1735 = vadd.f32 0.0, %v1734
        %v1736 = vpop.f32.mrb[0].mxu0
        %1737 = vmatprep.mubr.bf16.mxu0 0
        %1738 = vmatmul.mubr.bf16.gmra.mrb[0].mxu0 %v1634
        %v1739 = vpop.f32.mrb[0].mxu0
        %v1740 = vadd.f32 0.0, %v1739
        %v1741 = vpop.f32.mrb[0].mxu0
        %v1742 = vpop.f32.mrb[0].mxu0
        %v1743 = vadd.f32 0.0, %v1742
        %v1744 = vpop.f32.mrb[0].mxu0
        %1745 = vmatprep.mubr.bf16.mxu0 0
        %1746 = vmatmul.mubr.bf16.gmra.mrb[0].mxu0 %v1637
        %v1747 = vpop.f32.mrb[0].mxu0
        %v1748 = vadd.f32 0.0, %v1747
        %v1749 = vpop.f32.mrb[0].mxu0
        %v1750 = vpop.f32.mrb[0].mxu0
        %v1751 = vadd.f32 0.0, %v1750
        %v1752 = vpop.f32.mrb[0].mxu0
        %1753 = vmatprep.mubr.bf16.mxu0 0
        %1754 = vmatmul.mubr.bf16.gmra.mrb[0].mxu0 %v1640
        %v1755 = vpop.f32.mrb[0].mxu0
        %v1756 = vadd.f32 0.0, %v1755
        %v1757 = vpop.f32.mrb[0].mxu0
        %v1758 = vpop.f32.mrb[0].mxu0
        %v1759 = vadd.f32 0.0, %v1758
        %v1760 = vpop.f32.mrb[0].mxu0
        %1761 = vmatprep.mubr.bf16.mxu0 0
        %1762 = vmatmul.mubr.bf16.gmra.mrb[0].mxu0 %v1643
        %v1763 = vpop.f32.mrb[0].mxu0
        %v1764 = vadd.f32 0.0, %v1763
        %v1765 = vpop.f32.mrb[0].mxu0
        %v1766 = vpop.f32.mrb[0].mxu0
        %v1767 = vadd.f32 0.0, %v1766
        %v1768 = vpop.f32.mrb[0].mxu0
        %1769 = vmatprep.mubr.bf16.mxu0 0
        %1770 = vmatmul.mubr.bf16.gmra.mrb[0].mxu0 %v1646
        %v1771 = vpop.f32.mrb[0].mxu0
        %v1772 = vadd.f32 0.0, %v1771
        %v1773 = vpop.f32.mrb[0].mxu0
        %v1774 = vpop.f32.mrb[0].mxu0
        %v1775 = vadd.f32 0.0, %v1774
        %v1776 = vpop.f32.mrb[0].mxu0
        %1777 = vmatprep.mubr.bf16.mxu0 0
        %1778 = vmatmul.mubr.bf16.gmra.mrb[0].mxu0 %v1649
        %v1779 = vpop.f32.mrb[0].mxu0
        %v1780 = vadd.f32 0.0, %v1779
        %v1781 = vpop.f32.mrb[0].mxu0
        %v1782 = vpop.f32.mrb[0].mxu0
        %v1783 = vadd.f32 0.0, %v1782
        %v1784 = vpop.f32.mrb[0].mxu0
        %1785 = vmatprep.mubr.bf16.mxu0 0
        %1786 = vmatmul.mubr.bf16.gmra.mrb[0].mxu0 %v1652
        %v1787 = vpop.f32.mrb[0].mxu0
        %v1788 = vadd.f32 0.0, %v1787
        %v1789 = vpop.f32.mrb[0].mxu0
        %v1790 = vpop.f32.mrb[0].mxu0
        %v1791 = vadd.f32 0.0, %v1790
        %v1792 = vpop.f32.mrb[0].mxu0
        %1793 = vmatprep.mubr.bf16.mxu0 0
        %1794 = vmatmul.mubr.bf16.gmra.mrb[0].mxu0 %v1655
        %v1795 = vpop.f32.mrb[0].mxu0
        %v1796 = vadd.f32 0.0, %v1795
        %v1797 = vpop.f32.mrb[0].mxu0
        %v1798 = vpop.f32.mrb[0].mxu0
        %v1799 = vadd.f32 0.0, %v1798
        %v1800 = vpop.f32.mrb[0].mxu0
        %1801 = vmatprep.mubr.bf16.mxu0 0
        %1802 = vmatmul.mubr.bf16.gmra.mrb[0].mxu0 %v1658
        %v1803 = vpop.f32.mrb[0].mxu0
        %v1804 = vadd.f32 0.0, %v1803
        %v1805 = vpop.f32.mrb[0].mxu0
        %v1806 = vpop.f32.mrb[0].mxu0
        %v1807 = vadd.f32 0.0, %v1806
        %v1808 = vpop.f32.mrb[0].mxu0
        %1809 = vmatprep.mubr.bf16.mxu0 0
        %1810 = vmatmul.mubr.bf16.gmra.mrb[0].mxu0 %v1661
        %v1811 = vpop.f32.mrb[0].mxu0
        %v1812 = vadd.f32 0.0, %v1811
        %v1813 = vpop.f32.mrb[0].mxu0
        %v1814 = vpop.f32.mrb[0].mxu0
        %v1815 = vadd.f32 0.0, %v1814
        %v1816 = vpop.f32.mrb[0].mxu0
        %1817 = vmatprep.mubr.bf16.mxu0 0
        %1818 = vmatmul.mubr.bf16.gmra.mrb[0].mxu0 %v1664
        %v1819 = vpop.f32.mrb[0].mxu0
        %v1820 = vadd.f32 0.0, %v1819
        %v1821 = vpop.f32.mrb[0].mxu0
        %v1822 = vpop.f32.mrb[0].mxu0
        %v1823 = vadd.f32 0.0, %v1822
        %v1824 = vpop.f32.mrb[0].mxu0
        %1825 = vmatprep.mubr.bf16.mxu0 0
        %1826 = vmatmul.mubr.bf16.gmra.mrb[0].mxu0 %v1667
        %v1827 = vpop.f32.mrb[0].mxu0
        %v1828 = vadd.f32 0.0, %v1827
        %v1829 = vpop.f32.mrb[0].mxu0
        %v1830 = vpop.f32.mrb[0].mxu0
        %v1831 = vadd.f32 0.0, %v1830
        %v1832 = vpop.f32.mrb[0].mxu0
        %1833 = vdwg.mxu0
        %v1834 = vld [vmem:[%s2] sm:$0x1]
        %v1836 = vlaneseq
        %v1837 = vshrl.u32 %v1836, 7
        %v1838 = vsub.s32 0, %v1837
        %v1839 = vrot.slane %v1834, %v1838
        %v1841 = vmul.f32 %v1708, %v1839
        %v1842 = vmul.f32 %v1711, %v1839
        %v1843 = vmul.f32 %v1716, %v1839
        %v1844 = vmul.f32 %v1719, %v1839
        %v1845 = vmul.f32 %v1724, %v1839
        %v1846 = vmul.f32 %v1727, %v1839
        %v1847 = vmul.f32 %v1732, %v1839
        %v1848 = vmul.f32 %v1735, %v1839
        %v1849 = vmul.f32 %v1740, %v1839
        %v1850 = vmul.f32 %v1743, %v1839
        %v1851 = vmul.f32 %v1748, %v1839
        %v1852 = vmul.f32 %v1751, %v1839
        %v1853 = vmul.f32 %v1756, %v1839
        %v1854 = vmul.f32 %v1759, %v1839
        %v1855 = vmul.f32 %v1764, %v1839
        %v1856 = vmul.f32 %v1767, %v1839
        %v1857 = vmul.f32 %v1772, %v1839
        %v1858 = vmul.f32 %v1775, %v1839
        %v1859 = vmul.f32 %v1780, %v1839
        %v1860 = vmul.f32 %v1783, %v1839
        %v1861 = vmul.f32 %v1788, %v1839
        %v1862 = vmul.f32 %v1791, %v1839
        %v1863 = vmul.f32 %v1796, %v1839
        %v1864 = vmul.f32 %v1799, %v1839
        %v1865 = vmul.f32 %v1804, %v1839
        %v1866 = vmul.f32 %v1807, %v1839
        %v1867 = vmul.f32 %v1812, %v1839
        %v1868 = vmul.f32 %v1815, %v1839
        %v1869 = vmul.f32 %v1820, %v1839
        %v1870 = vmul.f32 %v1823, %v1839
        %v1871 = vmul.f32 %v1828, %v1839
        %v1872 = vmul.f32 %v1831, %v1839
        %v1873 = vld [vmem:[%s3] sm:$0x1]
        %v1875 = vlaneseq
        %v1876 = vshrl.u32 %v1875, 7
        %v1877 = vsub.s32 0, %v1876
        %v1878 = vrot.slane %v1873, %v1877
        %v1880 = vadd.f32 %v1841, %v1878
        %v1881 = vadd.f32 %v1842, %v1878
        %v1882 = vadd.f32 %v1843, %v1878
        %v1883 = vadd.f32 %v1844, %v1878
        %v1884 = vadd.f32 %v1845, %v1878
        %v1885 = vadd.f32 %v1846, %v1878
        %v1886 = vadd.f32 %v1847, %v1878
        %v1887 = vadd.f32 %v1848, %v1878
        %v1888 = vadd.f32 %v1849, %v1878
        %v1889 = vadd.f32 %v1850, %v1878
        %v1890 = vadd.f32 %v1851, %v1878
        %v1891 = vadd.f32 %v1852, %v1878
        %v1892 = vadd.f32 %v1853, %v1878
        %v1893 = vadd.f32 %v1854, %v1878
        %v1894 = vadd.f32 %v1855, %v1878
        %v1895 = vadd.f32 %v1856, %v1878
        %v1896 = vadd.f32 %v1857, %v1878
        %v1897 = vadd.f32 %v1858, %v1878
        %v1898 = vadd.f32 %v1859, %v1878
        %v1899 = vadd.f32 %v1860, %v1878
        %v1900 = vadd.f32 %v1861, %v1878
        %v1901 = vadd.f32 %v1862, %v1878
        %v1902 = vadd.f32 %v1863, %v1878
        %v1903 = vadd.f32 %v1864, %v1878
        %v1904 = vadd.f32 %v1865, %v1878
        %v1905 = vadd.f32 %v1866, %v1878
        %v1906 = vadd.f32 %v1867, %v1878
        %v1907 = vadd.f32 %v1868, %v1878
        %v1908 = vadd.f32 %v1869, %v1878
        %v1909 = vadd.f32 %v1870, %v1878
        %v1910 = vadd.f32 %v1871, %v1878
        %v1911 = vadd.f32 %v1872, %v1878
        %v1912 = vmax.f32 %v1880, 0.0
        %v1913 = vmax.f32 %v1881, 0.0
        %v1914 = vmax.f32 %v1882, 0.0
        %v1915 = vmax.f32 %v1883, 0.0
        %v1916 = vmax.f32 %v1884, 0.0
        %v1917 = vmax.f32 %v1885, 0.0
        %v1918 = vmax.f32 %v1886, 0.0
        %v1919 = vmax.f32 %v1887, 0.0
        %v1920 = vmax.f32 %v1888, 0.0
        %v1921 = vmax.f32 %v1889, 0.0
        %v1922 = vmax.f32 %v1890, 0.0
        %v1923 = vmax.f32 %v1891, 0.0
        %v1924 = vmax.f32 %v1892, 0.0
        %v1925 = vmax.f32 %v1893, 0.0
        %v1926 = vmax.f32 %v1894, 0.0
        %v1927 = vmax.f32 %v1895, 0.0
        %v1928 = vmax.f32 %v1896, 0.0
        %v1929 = vmax.f32 %v1897, 0.0
        %v1930 = vmax.f32 %v1898, 0.0
        %v1931 = vmax.f32 %v1899, 0.0
        %v1932 = vmax.f32 %v1900, 0.0
        %v1933 = vmax.f32 %v1901, 0.0
        %v1934 = vmax.f32 %v1902, 0.0
        %v1935 = vmax.f32 %v1903, 0.0
        %v1936 = vmax.f32 %v1904, 0.0
        %v1937 = vmax.f32 %v1905, 0.0
        %v1938 = vmax.f32 %v1906, 0.0
        %v1939 = vmax.f32 %v1907, 0.0
        %v1940 = vmax.f32 %v1908, 0.0
        %v1941 = vmax.f32 %v1909, 0.0
        %v1942 = vmax.f32 %v1910, 0.0
        %v1943 = vmax.f32 %v1911, 0.0
        %1944 = vst [vmem:[%s190] sm:$0xff] %v1912
        %1945 = vst [vmem:[%s190 + $0x8] sm:$0xff] %v1913
        %1946 = vst [vmem:[%s190 + $0x10] sm:$0xff] %v1914
        %1947 = vst [vmem:[%s190 + $0x18] sm:$0xff] %v1915
        %1948 = vst [vmem:[%s190 + $0x20] sm:$0xff] %v1916
        %1949 = vst [vmem:[%s190 + $0x28] sm:$0xff] %v1917
        %1950 = vst [vmem:[%s190 + $0x30] sm:$0xff] %v1918
        %1951 = vst [vmem:[%s190 + $0x38] sm:$0xff] %v1919
        %1952 = vst [vmem:[%s190 + $0x40] sm:$0xff] %v1920
        %1953 = vst [vmem:[%s190 + $0x48] sm:$0xff] %v1921
        %1954 = vst [vmem:[%s190 + $0x50] sm:$0xff] %v1922
        %1955 = vst [vmem:[%s190 + $0x58] sm:$0xff] %v1923
        %1956 = vst [vmem:[%s190 + $0x60] sm:$0xff] %v1924
        %1957 = vst [vmem:[%s190 + $0x68] sm:$0xff] %v1925
        %1958 = vst [vmem:[%s190 + $0x70] sm:$0xff] %v1926
        %1959 = vst [vmem:[%s190 + $0x78] sm:$0xff] %v1927
        %1960 = vst [vmem:[%s190 + $0x80] sm:$0xff] %v1928
        %1961 = vst [vmem:[%s190 + $0x88] sm:$0xff] %v1929
        %1962 = vst [vmem:[%s190 + $0x90] sm:$0xff] %v1930
        %1963 = vst [vmem:[%s190 + $0x98] sm:$0xff] %v1931
        %1964 = vst [vmem:[%s190 + $0xa0] sm:$0xff] %v1932
        %1965 = vst [vmem:[%s190 + $0xa8] sm:$0xff] %v1933
        %1966 = vst [vmem:[%s190 + $0xb0] sm:$0xff] %v1934
        %1967 = vst [vmem:[%s190 + $0xb8] sm:$0xff] %v1935
        %1968 = vst [vmem:[%s190 + $0xc0] sm:$0xff] %v1936
        %1969 = vst [vmem:[%s190 + $0xc8] sm:$0xff] %v1937
        %1970 = vst [vmem:[%s190 + $0xd0] sm:$0xff] %v1938
        %1971 = vst [vmem:[%s190 + $0xd8] sm:$0xff] %v1939
        %1972 = vst [vmem:[%s190 + $0xe0] sm:$0xff] %v1940
        %1973 = vst [vmem:[%s190 + $0xe8] sm:$0xff] %v1941
        %1974 = vst [vmem:[%s190 + $0xf0] sm:$0xff] %v1942
        %1975 = vst [vmem:[%s190 + $0xf8] sm:$0xff] %v1943
        %s1976 = sand.u32 %s115, 1
        %s1977 = scalar_lea.sflag [#allocation4], %s1976
        %s1978 = sand.u32 %s115, 1
        %s1979 = smul.addr %s1978, 256
        %s1980 = scalar_lea.vmem [#allocation3], %s1979
        // Predicated region
        $region37: #{tpu_custom_call.1} parent=35 // pred_check
          %p1981 = pneg %p125
        $region38: #{tpu_custom_call.1} parent=35 // pred_check_branch
          %1983 = sbr.rel (%p1981) target = $region40
        $region39: #{tpu_custom_call.1} parent=35 // pred_region
          %s1985 = ssub.s32 4096, 4096
          %1986 = vsyncadd %s1977, %s1985
          %s1987 = smul.addr %s18, 32
          %s1988 = smul.addr %s1987, 128
          %s1989 = scalar_lea.hbm %s4, %s1988
          %s1990 = sshll.u32 %s1980, 4
          %s1991 = int_to_ptr.vmem [resolvable:$true] %s1990
          %1996 = dma.vmem_to_hbm [thread:$0]  %s1991, 4096, %s1989, %s1977, 128, 128, 8
        $region40: #{tpu_custom_call.1} parent=35 // pred_fallthru
          _
      $region36: #{tpu_custom_call.1} parent=5 // pred_fallthru
        _
      %p1997 = scmp.le.s32.totalorder 2, %s13
      // Predicated region
      $region41: #{tpu_custom_call.1} parent=5 // pred_check
        %p1998 = pneg %p1997
      $region42: #{tpu_custom_call.1} parent=5 // pred_check_branch
        %2000 = sbr.rel (%p1998) target = $region44
      $region43: #{tpu_custom_call.1} parent=5 // pred_region
        %s2001 = ssub.s32 %s13, 2
        // Predicated region
        $region45: #{tpu_custom_call.1} parent=43 // pred_check
          %p2002 = pneg %p131
        $region46: #{tpu_custom_call.1} parent=43 // pred_check_branch
          %2004 = sbr.rel (%p2002) target = $region48
        $region47: #{tpu_custom_call.1} parent=43 // pred_region
          %s2005 = sand.u32 %s116, 1
          %s2006 = scalar_lea.sflag [#allocation4], %s2005
          %s2007 = sand.u32 %s116, 1
          %s2008 = smul.addr %s2007, 256
          %s2009 = scalar_lea.vmem [#allocation3], %s2008
          %2010 = dma.done %s2006, 4096
        $region48: #{tpu_custom_call.1} parent=43 // pred_fallthru
          _
      $region44: #{tpu_custom_call.1} parent=5 // pred_fallthru
        _
    $region6: #{tpu_custom_call.1} parent=1 // loop_footer
      %s17 = sadd.s32 1, %s13
    $region7: #{tpu_custom_call.1} parent=1 // loop_footer_branch
      %12 = sbr.rel target = $region3
    $region8: #{tpu_custom_call.1} parent=1 // loop_exit
      _
    %2011 = vsyncpa [#allocation4], 1
    %s2012 = scalar_lea.sflag [#allocation4], 1
    %2013 = vsyncpa %s2012, 1

</llo_original>
